<compile_context>
chip_gen: v5e
topology: v5e:2x2
jax: 0.10.0
libtpu: 0.0.40
codegen_flags: <defaults>
</compile_context>

<pallas_src>
import math

import jax
import jax.numpy as jnp
from jax.experimental import pallas as pl
from jax.experimental.pallas import tpu as pltpu

_LOG3 = math.log(3.0)
_HIGHEST = jax.lax.Precision.HIGHEST


def _spatial_prior_kernel(proj_ref, nd2_ref, seg_exp_ref, seg_sum_ref, out_ref):
    # proj_ref   : (TR, B)      raw sigma1 projection; row n = (head, l) pair
    # nd2_ref    : (1, B*B)     flattened -0.5 * D**2          (grid-invariant)
    # seg_exp_ref: (B, B*B)     0/1 kron(I_B, ones(1, B))      (grid-invariant)
    # seg_sum_ref: (B*B, B)     seg_exp.T                      (grid-invariant)
    # out_ref    : (TR, B*B)    lane-dense normalized prior rows
    proj = proj_ref[...]                                                   # (TR, B)

    # sigma = 3 ** (sigmoid(5 * proj) + 1e-5) - 1
    sigma = jnp.exp(_LOG3 * (jax.nn.sigmoid(proj * 5.0) + 1e-5)) - 1.0     # (TR, B)
    inv_sigma = pl.reciprocal(sigma)                                       # exact
    inv_sigma_sq = inv_sigma * inv_sigma                                   # (TR, B)

    # Spread 1/sigma^2 to the lane-dense B*B axis on the MXU (0/1 selector is
    # exact at HIGHEST precision).
    inv_sq_wide = jnp.dot(inv_sigma_sq, seg_exp_ref[...],
                          preferred_element_type=jnp.float32,
                          precision=_HIGHEST)                              # (TR, B*B)

    # exp(-D^2 / (2 sigma^2)); the 1/(sqrt(2*pi)*sigma) prefactor cancels in
    # the row normalization below, so it is skipped.
    e = jnp.exp(nd2_ref[...] * inv_sq_wide)                                # (TR, B*B)

    # Segmented row sums over each B-lane group (MXU), reciprocal, spread back.
    row_sum = jnp.dot(e, seg_sum_ref[...],
                      preferred_element_type=jnp.float32,
                      precision=_HIGHEST)                                  # (TR, B)
    inv_row = pl.reciprocal(row_sum)                                       # exact
    inv_row_wide = jnp.dot(inv_row, seg_exp_ref[...],
                           preferred_element_type=jnp.float32,
                           precision=_HIGHEST)                             # (TR, B*B)

    out_ref[...] = (e * inv_row_wide).astype(out_ref.dtype)


def _row_tiling(n_rows, bytes_per_row, cap_bytes=2 * 1024 * 1024):
    """Pick a row-tile TR (multiple of 8) with TR * bytes_per_row <= cap_bytes.

    Returns (TR, padded_rows).  Prefers an exact divisor of n_rows (no pad /
    no trim copy) and >= 2 grid steps (megacore) when possible; otherwise pads
    n_rows up to a multiple of TR (never falls back to a full-array block).
    """
    max_tr = max(8, (cap_bytes // max(bytes_per_row, 1)) // 8 * 8)
    best = 0
    for tr in range(8, min(n_rows, max_tr) + 1, 8):
        if n_rows % tr == 0:
            best = tr
    if best:
        # Split a single-step grid in two so both TensorCores get work.
        if n_rows // best == 1 and best > 8 and best % 16 == 0:
            best //= 2
        return best, n_rows
    tr = min(max_tr, ((n_rows + 7) // 8) * 8)
    n_pad = ((n_rows + tr - 1) // tr) * tr
    return tr, n_pad


def spatial_anomaly_attention(x, w_sigma1, b_sigma1, D, out_dtype=jnp.float32):
    """x: (B, L, d_model); w_sigma1: (d_model, H); b_sigma1: (H,); D: (B, B).

    Returns the normalized spatial prior of shape (H, L, B, B), matching the
    PyTorch module's  prior1 / prior1.sum(-1, keepdims=True).
    """
    B, L, d_model = x.shape
    H = w_sigma1.shape[1]
    BB = B * B

    # Fused projection in XLA (tiny matmul); rows are flattened (head, l) pairs.
    proj = (jnp.einsum("bld,dh->hlb", x.astype(jnp.float32),
                       w_sigma1.astype(jnp.float32))
            + b_sigma1.astype(jnp.float32)[:, None, None])                 # (H, L, B)
    n_rows = H * L
    proj2d = proj.reshape(n_rows, B)

    # Grid-invariant constants: flattened -(D^2)/2 and the 0/1 segment matrices.
    nd2 = ((-0.5) * (D.astype(jnp.float32) ** 2)).reshape(1, BB)           # (1, B*B)
    seg_exp = jnp.kron(jnp.eye(B, dtype=jnp.float32),
                       jnp.ones((1, B), jnp.float32))                      # (B, B*B)
    seg_sum = seg_exp.T                                                    # (B*B, B)

    tr, n_pad = _row_tiling(n_rows, BB * 4)
    if n_pad != n_rows:
        proj2d = jnp.pad(proj2d, ((0, n_pad - n_rows), (0, 0)))

    out2d = pl.pallas_call(
        _spatial_prior_kernel,
        out_shape=jax.ShapeDtypeStruct((n_pad, BB), out_dtype),
        grid=(n_pad // tr,),
        in_specs=[
            pl.BlockSpec((tr, B), lambda r: (r, 0)),
            pl.BlockSpec((1, BB), lambda r: (0, 0)),
            pl.BlockSpec((B, BB), lambda r: (0, 0)),
            pl.BlockSpec((BB, B), lambda r: (0, 0)),
        ],
        out_specs=pl.BlockSpec((tr, BB), lambda r: (r, 0)),
        compiler_params=pltpu.CompilerParams(
            dimension_semantics=("parallel",),
            vmem_limit_bytes=40 * 1024 * 1024,
        ),
    )(proj2d, nd2, seg_exp, seg_sum)

    if n_pad != n_rows:
        out2d = out2d[:n_rows]
    return out2d.reshape(H, L, B, B)


def _reference(x, w_sigma1, b_sigma1, D):
    """Pure-JAX replica of the executed PyTorch forward, for correctness."""
    proj = x @ w_sigma1 + b_sigma1                        # (B, L, H)
    sigma1 = jnp.transpose(proj, (2, 1, 0))               # .swapaxes(0, 2) -> (H, L, B)
    sigma1 = jax.nn.sigmoid(sigma1 * 5.0) + 1e-5
    sigma1 = jnp.power(3.0, sigma1) - 1.0
    sigma1 = sigma1[..., None]                            # (H, L, B, 1) == repeat
    d2 = D.astype(jnp.float32) ** 2
    prior1 = (1.0 / (math.sqrt(2.0 * math.pi) * sigma1)) * jnp.exp(
        -d2 / (2.0 * sigma1 ** 2))
    return prior1 / prior1.sum(-1, keepdims=True)


if __name__ == "__main__":
    B, L, d_model, H = 16, 16, 32, 4   # batch/spatial nodes, seq, d_model, n_heads

    key = jax.random.PRNGKey(0)
    kx, kw, kb, kp = jax.random.split(key, 4)

    x = jax.random.normal(kx, (B, L, d_model), dtype=jnp.float32)

    # nn.Linear default init: U(-1/sqrt(fan_in), 1/sqrt(fan_in)); weight stored
    # (d_model, H) so the projection is x @ W + b.
    bound = 1.0 / math.sqrt(d_model)
    w_sigma1 = jax.random.uniform(kw, (d_model, H), jnp.float32, -bound, bound)
    b_sigma1 = jax.random.uniform(kb, (H,), jnp.float32, -bound, bound)

    # Spatial distance matrix D (the module's static buffer): pairwise Euclidean
    # distances between B random 2-D points -> symmetric, zero diagonal.
    pts = jax.random.uniform(kp, (B, 2), jnp.float32)
    D = jnp.sqrt(jnp.sum((pts[:, None, :] - pts[None, :, :]) ** 2, axis=-1))

    out = spatial_anomaly_attention(x, w_sigma1, b_sigma1, D)
    out = jax.block_until_ready(out)

    ref = _reference(x, w_sigma1, b_sigma1, D)
    assert out.shape == (H, L, B, B), out.shape
    assert bool(jnp.all(jnp.isfinite(out))), "non-finite output"
    assert jnp.allclose(out, ref, rtol=1e-5, atol=1e-5), (
        "mismatch vs reference, max abs err = "
        + str(float(jnp.max(jnp.abs(out - ref)))))

    print("KERNEL_OK")
</pallas_src>

<mosaic_0001>
module attributes {stable_mosaic.version = 11 : i64} {
  func.func @_spatial_prior_kernel(%arg0: i32, %arg1: memref<32x16xf32, #tpu.memory_space<vmem>>, %arg2: memref<1x256xf32, #tpu.memory_space<vmem>>, %arg3: memref<16x256xf32, #tpu.memory_space<vmem>>, %arg4: memref<256x16xf32, #tpu.memory_space<vmem>>, %arg5: memref<32x256xf32, #tpu.memory_space<vmem>>) attributes {dimension_semantics = [#tpu.dimension_semantics<parallel>], iteration_bounds = array<i64: 2>, scalar_prefetch = 0 : i64, scratch_operands = 0 : i64, tpu.core_type = #tpu.core_type<tc>, window_params = [{transform_indices = @transform_0, window_bounds = array<i64: 32, 16>}, {pipeline_mode = #tpu.pipeline_mode<synchronous>, transform_indices = @transform_1, window_bounds = array<i64: 1, 256>}, {pipeline_mode = #tpu.pipeline_mode<synchronous>, transform_indices = @transform_2, window_bounds = array<i64: 16, 256>}, {pipeline_mode = #tpu.pipeline_mode<synchronous>, transform_indices = @transform_3, window_bounds = array<i64: 256, 16>}, {transform_indices = @transform_4, window_bounds = array<i64: 32, 256>}]} {
    %c0 = arith.constant 0 : index
    %c0_0 = arith.constant 0 : index
    %0 = vector.load %arg1[%c0, %c0_0] : memref<32x16xf32, #tpu.memory_space<vmem>>, vector<32x16xf32>
    %cst = arith.constant 5.000000e+00 : f32
    %1 = vector.broadcast %cst : f32 to vector<32x16xf32>
    %2 = arith.mulf %0, %1 : vector<32x16xf32>
    %3 = arith.negf %2 : vector<32x16xf32>
    %4 = math.exp %3 : vector<32x16xf32>
    %cst_1 = arith.constant 1.000000e+00 : f32
    %5 = vector.broadcast %cst_1 : f32 to vector<32x16xf32>
    %6 = arith.addf %5, %4 : vector<32x16xf32>
    %7 = arith.divf %5, %6 : vector<32x16xf32>
    %cst_2 = arith.constant 9.99999974E-6 : f32
    %8 = vector.broadcast %cst_2 : f32 to vector<32x16xf32>
    %9 = arith.addf %7, %8 : vector<32x16xf32>
    %cst_3 = arith.constant 1.09861231 : f32
    %10 = vector.broadcast %cst_3 : f32 to vector<32x16xf32>
    %11 = arith.mulf %10, %9 : vector<32x16xf32>
    %12 = math.exp %11 : vector<32x16xf32>
    %cst_4 = arith.constant 1.000000e+00 : f32
    %13 = vector.broadcast %cst_4 : f32 to vector<32x16xf32>
    %14 = arith.subf %12, %13 : vector<32x16xf32>
    %15 = tpu.reciprocal %14 : vector<32x16xf32> -> vector<32x16xf32>
    %16 = arith.mulf %15, %15 : vector<32x16xf32>
    %c0_5 = arith.constant 0 : index
    %c0_6 = arith.constant 0 : index
    %17 = vector.load %arg3[%c0_5, %c0_6] : memref<16x256xf32, #tpu.memory_space<vmem>>, vector<16x256xf32>
    %cst_7 = arith.constant dense<0.000000e+00> : vector<32x256xf32>
    %18 = tpu.matmul %16, %17, %cst_7 {dimension_numbers = #tpu.dot_dimension_numbers<[1], [0], [0], [1], [0, 0, 1, 1], [], []>, precision = #tpu.contract_precision<fp32>} : vector<32x16xf32>, vector<16x256xf32>, vector<32x256xf32> -> vector<32x256xf32>
    %c0_8 = arith.constant 0 : index
    %c0_9 = arith.constant 0 : index
    %19 = vector.load %arg2[%c0_8, %c0_9] : memref<1x256xf32, #tpu.memory_space<vmem>>, vector<1x256xf32>
    %20 = vector.broadcast %19 : vector<1x256xf32> to vector<32x256xf32>
    %21 = arith.mulf %20, %18 : vector<32x256xf32>
    %22 = math.exp %21 : vector<32x256xf32>
    %c0_10 = arith.constant 0 : index
    %c0_11 = arith.constant 0 : index
    %23 = vector.load %arg4[%c0_10, %c0_11] : memref<256x16xf32, #tpu.memory_space<vmem>>, vector<256x16xf32>
    %cst_12 = arith.constant dense<0.000000e+00> : vector<32x16xf32>
    %24 = tpu.matmul %22, %23, %cst_12 {dimension_numbers = #tpu.dot_dimension_numbers<[1], [0], [0], [1], [0, 0, 1, 1], [], []>, precision = #tpu.contract_precision<fp32>} : vector<32x256xf32>, vector<256x16xf32>, vector<32x16xf32> -> vector<32x16xf32>
    %25 = tpu.reciprocal %24 : vector<32x16xf32> -> vector<32x16xf32>
    %c0_13 = arith.constant 0 : index
    %c0_14 = arith.constant 0 : index
    %26 = vector.load %arg3[%c0_13, %c0_14] : memref<16x256xf32, #tpu.memory_space<vmem>>, vector<16x256xf32>
    %cst_15 = arith.constant dense<0.000000e+00> : vector<32x256xf32>
    %27 = tpu.matmul %25, %26, %cst_15 {dimension_numbers = #tpu.dot_dimension_numbers<[1], [0], [0], [1], [0, 0, 1, 1], [], []>, precision = #tpu.contract_precision<fp32>} : vector<32x16xf32>, vector<16x256xf32>, vector<32x256xf32> -> vector<32x256xf32>
    %28 = arith.mulf %22, %27 : vector<32x256xf32>
    %c0_16 = arith.constant 0 : index
    %c0_17 = arith.constant 0 : index
    %29 = vector.load %arg5[%c0_16, %c0_17] : memref<32x256xf32, #tpu.memory_space<vmem>>, vector<32x256xf32>
    tpu.vector_store %arg5[%c0_16, %c0_17], %28 {strides = array<i32>} : memref<32x256xf32, #tpu.memory_space<vmem>>, vector<32x256xf32>,
    return
  }
  func.func @transform_0(%arg0: i32) -> (i32, i32) {
    %c0_i32 = arith.constant 0 : i32
    %c0_i32_0 = arith.constant 0 : i32
    return %arg0, %c0_i32 : i32, i32
  }
  func.func @transform_1(%arg0: i32) -> (i32, i32) {
    %c0_i32 = arith.constant 0 : i32
    %c0_i32_0 = arith.constant 0 : i32
    %c0_i32_1 = arith.constant 0 : i32
    return %c0_i32, %c0_i32_0 : i32, i32
  }
  func.func @transform_2(%arg0: i32) -> (i32, i32) {
    %c0_i32 = arith.constant 0 : i32
    %c0_i32_0 = arith.constant 0 : i32
    %c0_i32_1 = arith.constant 0 : i32
    return %c0_i32, %c0_i32_0 : i32, i32
  }
  func.func @transform_3(%arg0: i32) -> (i32, i32) {
    %c0_i32 = arith.constant 0 : i32
    %c0_i32_0 = arith.constant 0 : i32
    %c0_i32_1 = arith.constant 0 : i32
    return %c0_i32, %c0_i32_0 : i32, i32
  }
  func.func @transform_4(%arg0: i32) -> (i32, i32) {
    %c0_i32 = arith.constant 0 : i32
    %c0_i32_0 = arith.constant 0 : i32
    return %arg0, %c0_i32 : i32, i32
  }
}

</mosaic_0001>

<llo_original>
// kernel: tpu_custom_call.1
$region0: #{tpu_custom_call.1}
  #allocation0 [shape = 'u32[]', space=smem, size = 0x4, offset = 0x4, fixed_abs, tag = 'smem constant byte address 0x4 - core index']
  #allocation1 [shape = 'u32[72,128]{1,0:T(1,128)}', space=vmem, size = 0x9000, scoped, tag = 'internal scratch']
  %s0 = inlined_call_operand.vmem [shape: f32[64,16], index: 0, kind: input, shape index: {}]
  %s1 = inlined_call_operand.vmem [shape: f32[1,256], index: 1, kind: input, shape index: {}]
  %s2 = inlined_call_operand.vmem [shape: f32[16,256], index: 2, kind: input, shape index: {}]
  %s3 = inlined_call_operand.vmem [shape: f32[256,16], index: 3, kind: input, shape index: {}]
  %s4 = inlined_call_operand.hbm [shape: f32[64,256], index: 4, kind: output, shape index: {}]
  %s5 = sld [smem:[#allocation0]]
  $region49: #{tpu_custom_call.1} parent=0
    _
  %s7 = ssub.s32 1, %s5
  %s8 = scalar_select 0, %s7, %s5
  $region1: #{tpu_custom_call.1} parent=0
    #allocation2 [shape = 'u8[65536]{0}', space=vmem, size = 0x10000, scoped, tag = 'output window, operand 0']
    #allocation3 [shape = 's32[2]{0}', space=sflag, size = 0x8, scoped, tag = 'scoped memory for tpu_custom_call.1']
    %9 = vsyncpa [#allocation3], 0
    %s10 = scalar_lea.sflag [#allocation3], 1
    %11 = vsyncpa %s10, 0
    loop: start=0, step=1, limit=4
    $region2: #{tpu_custom_call.1} parent=1 // loop_pre_header
      _
    $region3: #{tpu_custom_call.1} parent=1 // loop_header
      %s13 = sphi 0, %s17
      %p14 = scmp.ge.s32.totalorder %s13, 4
      %s23 = sphi 0, %s25
      %s26 = sphi 0, %s23
      %s27 = sphi 0, %s26
      %s43 = sphi 0, %s27
      %s47 = sphi 0, %s47
      %s49 = sphi 0, %s47
      %s50 = sphi 0, %s49
      %s64 = sphi 0, %s50
      %s68 = sphi 0, %s68
      %s70 = sphi 0, %s68
      %s71 = sphi 0, %s70
      %s85 = sphi 0, %s71
      %s89 = sphi 0, %s89
      %s91 = sphi 0, %s89
      %s92 = sphi 0, %s91
      %s106 = sphi 0, %s92
      %s112 = sphi 0, %s114
      %s115 = sphi 0, %s112
      %s116 = sphi 0, %s115
      %s132 = sphi 0, %s116
    $region4: #{tpu_custom_call.1} parent=1 // loop_header_branch
      %16 = sbr.rel (%p14) target = $region8
    $region5: #{tpu_custom_call.1} parent=1 // loop_body
      %s18 = ssub.s32 %s13, 1
      %s19 = ssub.s32 %s13, 2
      %s20 = sadd.s32 %s13, 1
      %s21 = ssub.s32 %s13, %s20
      %p22 = scmp.eq.s32.totalorder %s21, 0
      %s24 = sadd.s32 %s23, 1
      %s25 = scalar_select %p22, %s23, %s24
      %p28 = pneg %p22
      %p29 = scmp.eq.s32.totalorder %s13, 1
      %p30 = por %p28, %p29
      %p31 = scmp.ne.s32.totalorder %s23, %s26
      %p32 = scmp.eq.s32.totalorder %s13, 0
      %p33 = por %p31, %p32
      %p34 = scmp.ne.s32.totalorder %s23, %s26
      %p35 = scmp.eq.s32.totalorder %s18, 1
      %p36 = por %p34, %p35
      %p37 = scmp.ne.s32.totalorder %s26, %s27
      %p38 = scmp.eq.s32.totalorder %s18, 0
      %p39 = por %p37, %p38
      %p40 = scmp.ne.s32.totalorder %s26, %s27
      %p41 = scmp.eq.s32.totalorder %s19, 1
      %p42 = por %p40, %p41
      %p44 = scmp.ne.s32.totalorder %s27, %s43
      %p45 = scmp.eq.s32.totalorder %s19, 0
      %p46 = por %p44, %p45
      %s48 = sadd.s32 %s47, 1
      %p51 = scmp.eq.s32.totalorder %s13, 1
      %p52 = scmp.ne.s32.totalorder %s47, %s49
      %p53 = scmp.eq.s32.totalorder %s13, 0
      %p54 = por %p52, %p53
      %p55 = scmp.ne.s32.totalorder %s47, %s49
      %p56 = scmp.eq.s32.totalorder %s18, 1
      %p57 = por %p55, %p56
      %p58 = scmp.ne.s32.totalorder %s49, %s50
      %p59 = scmp.eq.s32.totalorder %s18, 0
      %p60 = por %p58, %p59
      %p61 = scmp.ne.s32.totalorder %s49, %s50
      %p62 = scmp.eq.s32.totalorder %s19, 1
      %p63 = por %p61, %p62
      %p65 = scmp.ne.s32.totalorder %s50, %s64
      %p66 = scmp.eq.s32.totalorder %s19, 0
      %p67 = por %p65, %p66
      %s69 = sadd.s32 %s68, 1
      %p72 = scmp.eq.s32.totalorder %s13, 1
      %p73 = scmp.ne.s32.totalorder %s68, %s70
      %p74 = scmp.eq.s32.totalorder %s13, 0
      %p75 = por %p73, %p74
      %p76 = scmp.ne.s32.totalorder %s68, %s70
      %p77 = scmp.eq.s32.totalorder %s18, 1
      %p78 = por %p76, %p77
      %p79 = scmp.ne.s32.totalorder %s70, %s71
      %p80 = scmp.eq.s32.totalorder %s18, 0
      %p81 = por %p79, %p80
      %p82 = scmp.ne.s32.totalorder %s70, %s71
      %p83 = scmp.eq.s32.totalorder %s19, 1
      %p84 = por %p82, %p83
      %p86 = scmp.ne.s32.totalorder %s71, %s85
      %p87 = scmp.eq.s32.totalorder %s19, 0
      %p88 = por %p86, %p87
      %s90 = sadd.s32 %s89, 1
      %p93 = scmp.eq.s32.totalorder %s13, 1
      %p94 = scmp.ne.s32.totalorder %s89, %s91
      %p95 = scmp.eq.s32.totalorder %s13, 0
      %p96 = por %p94, %p95
      %p97 = scmp.ne.s32.totalorder %s89, %s91
      %p98 = scmp.eq.s32.totalorder %s18, 1
      %p99 = por %p97, %p98
      %p100 = scmp.ne.s32.totalorder %s91, %s92
      %p101 = scmp.eq.s32.totalorder %s18, 0
      %p102 = por %p100, %p101
      %p103 = scmp.ne.s32.totalorder %s91, %s92
      %p104 = scmp.eq.s32.totalorder %s19, 1
      %p105 = por %p103, %p104
      %p107 = scmp.ne.s32.totalorder %s92, %s106
      %p108 = scmp.eq.s32.totalorder %s19, 0
      %p109 = por %p107, %p108
      %s110 = ssub.s32 %s13, %s20
      %p111 = scmp.eq.s32.totalorder %s110, 0
      %s113 = sadd.s32 %s112, 1
      %s114 = scalar_select %p111, %s112, %s113
      %p117 = pneg %p111
      %p118 = scmp.eq.s32.totalorder %s13, 1
      %p119 = por %p117, %p118
      %p120 = scmp.ne.s32.totalorder %s112, %s115
      %p121 = scmp.eq.s32.totalorder %s13, 0
      %p122 = por %p120, %p121
      %p123 = scmp.ne.s32.totalorder %s112, %s115
      %p124 = scmp.eq.s32.totalorder %s18, 1
      %p125 = por %p123, %p124
      %p126 = scmp.ne.s32.totalorder %s115, %s116
      %p127 = scmp.eq.s32.totalorder %s18, 0
      %p128 = por %p126, %p127
      %p129 = scmp.ne.s32.totalorder %s115, %s116
      %p130 = scmp.eq.s32.totalorder %s19, 1
      %p131 = por %p129, %p130
      %p133 = scmp.ne.s32.totalorder %s116, %s132
      %p134 = scmp.eq.s32.totalorder %s19, 0
      %p135 = por %p133, %p134
      %p136 = scmp.le.s32.totalorder 1, %s13
      %p137 = scmp.lt.s32.totalorder %s13, 3
      %p138 = pnand %p136, %p137
      %p139 = pneg %p138
      // Predicated region
      $region9: #{tpu_custom_call.1} parent=5 // pred_check
        _
      $region10: #{tpu_custom_call.1} parent=5 // pred_check_branch
        %141 = sbr.rel (%p138) target = $region12
      $region11: #{tpu_custom_call.1} parent=5 // pred_region
        %s142 = ssub.s32 %s13, 1
        // Predicated region
        $region13: #{tpu_custom_call.1} parent=11 // pred_check
          %p143 = pneg %p60
        $region14: #{tpu_custom_call.1} parent=11 // pred_check_branch
          %145 = sbr.rel (%p143) target = $region16
        $region15: #{tpu_custom_call.1} parent=11 // pred_region
          _
        $region16: #{tpu_custom_call.1} parent=11 // pred_fallthru
          _
        // Predicated region
        $region17: #{tpu_custom_call.1} parent=11 // pred_check
          %p146 = pneg %p81
        $region18: #{tpu_custom_call.1} parent=11 // pred_check_branch
          %148 = sbr.rel (%p146) target = $region20
        $region19: #{tpu_custom_call.1} parent=11 // pred_region
          _
        $region20: #{tpu_custom_call.1} parent=11 // pred_fallthru
          _
        // Predicated region
        $region21: #{tpu_custom_call.1} parent=11 // pred_check
          %p149 = pneg %p102
        $region22: #{tpu_custom_call.1} parent=11 // pred_check_branch
          %151 = sbr.rel (%p149) target = $region24
        $region23: #{tpu_custom_call.1} parent=11 // pred_region
          _
        $region24: #{tpu_custom_call.1} parent=11 // pred_fallthru
          _
      $region12: #{tpu_custom_call.1} parent=5 // pred_fallthru
        _
      %p152 = scmp.lt.s32.totalorder %s13, 2
      // Predicated region
      $region25: #{tpu_custom_call.1} parent=5 // pred_check
        %p153 = pneg %p152
      $region26: #{tpu_custom_call.1} parent=5 // pred_check_branch
        %155 = sbr.rel (%p153) target = $region28
      $region27: #{tpu_custom_call.1} parent=5 // pred_region
        // Predicated region
        $region29: #{tpu_custom_call.1} parent=27 // pred_check
          %p156 = pneg %p33
        $region30: #{tpu_custom_call.1} parent=27 // pred_check_branch
          %158 = sbr.rel (%p156) target = $region32
        $region31: #{tpu_custom_call.1} parent=27 // pred_region
          %s159 = smul.u32 4, %s13
          %p160 = scmp.lt.s32.totalorder %s159, 7
          %s161 = scalar_select %p160, %s159, 7
          %s162 = smul.addr %s161, 8
          %s163 = scalar_lea.vmem %s0, %s162
          %s164 = smul.u32 4, %s13
        $region32: #{tpu_custom_call.1} parent=27 // pred_fallthru
          _
      $region28: #{tpu_custom_call.1} parent=5 // pred_fallthru
        _
      %p165 = scmp.le.s32.totalorder 1, %s13
      %p166 = scmp.lt.s32.totalorder %s13, 3
      %p167 = pnand %p165, %p166
      %p168 = pneg %p167
      // Predicated region
      $region33: #{tpu_custom_call.1} parent=5 // pred_check
        _
      $region34: #{tpu_custom_call.1} parent=5 // pred_check_branch
        %170 = sbr.rel (%p167) target = $region36
      $region35: #{tpu_custom_call.1} parent=5 // pred_region
        %s171 = ssub.s32 %s13, 1
        %s172 = smul.u32 4, %s18
        %p173 = scmp.lt.s32.totalorder %s172, 7
        %s174 = scalar_select %p173, %s172, 7
        %s175 = smul.addr %s174, 8
        %s176 = scalar_lea.vmem %s0, %s175
        %p177 = pneg %p39
        %p178 = pneg %p36
        %p179 = pneg %p60
        %p180 = pneg %p57
        %p181 = pneg %p81
        %p182 = pneg %p78
        %p183 = pneg %p102
        %p184 = pneg %p99
        %p185 = pneg %p128
        %p186 = pneg %p125
        %s187 = sand.u32 %s115, 1
        %s188 = scalar_lea.sflag [#allocation3], %s187
        %s189 = sand.u32 %s115, 1
        %s190 = smul.addr %s189, 64
        %s191 = scalar_lea.vmem [#allocation2], %s190
        %s192 = smul.u32 4, %s18
        %p193 = scmp.lt.s32.totalorder %s192, 7
        %s194 = scalar_select %p193, %s192, 7
        %s195 = smul.addr %s194, 8
        %s196 = scalar_lea.vmem %s0, %s195
        %s197 = smul.u32 4, %s18
        %s198 = smul.u32 4, %s18
        %v199 = vld [vmem:[%s196] sm:$0xff]
        %v200 = vld [vmem:[%s196 + $0x8] sm:$0xff]
        %v201 = vld [vmem:[%s196 + $0x10] sm:$0xff]
        %v202 = vld [vmem:[%s196 + $0x18] sm:$0xff]
        %v203 = vmul.f32 %v199, 5.0
        %v204 = vmul.f32 %v200, 5.0
        %v205 = vmul.f32 %v201, 5.0
        %v206 = vmul.f32 %v202, 5.0
        %v207 = vxor.u32 %v203, 2147483648
        %v208 = vxor.u32 %v204, 2147483648
        %v209 = vxor.u32 %v205, 2147483648
        %v210 = vxor.u32 %v206, 2147483648
        %v211 = vmul.f32 %v207, 1.442695
        %v212 = vpow.pop %v211
        %v213 = vmul.f32 %v208, 1.442695
        %v214 = vpow.pop %v213
        %v215 = vmul.f32 %v209, 1.442695
        %v216 = vpow.pop %v215
        %v217 = vmul.f32 %v210, 1.442695
        %v218 = vpow.pop %v217
        %v219 = vadd.f32 %v212, 1.0
        %v220 = vadd.f32 %v214, 1.0
        %v221 = vadd.f32 %v216, 1.0
        %v222 = vadd.f32 %v218, 1.0
        %v223 = vrcp.pop %v219
        %v224 = vmul.f32 %v219, %v223
        %v225 = vsub.f32 1.0, %v224
        %v226 = vmul.f32 %v223, %v225
        %v227 = vadd.f32 %v223, %v226
        %vm228 = vweird.f32 %v219
        %vm229 = vweird.f32 %v223
        %vm230 = vmor %vm228, %vm229
        %v231 = vsel %vm230, %v223, %v227
        %v232 = vand.u32 2147483647, %v219
        %vm233 = vcmp.eq.f32.partialorder %v232, 8.507059e+37
        %v234 = vand.u32 %v219, 2147483648
        %v235 = vor.u32 1.1754944e-38, %v234
        %v236 = vsel %vm233, %v235, %v231
        %v237 = vmul.f32 1.0, %v236
        %v238 = vrcp.pop %v220
        %v239 = vmul.f32 %v220, %v238
        %v240 = vsub.f32 1.0, %v239
        %v241 = vmul.f32 %v238, %v240
        %v242 = vadd.f32 %v238, %v241
        %vm243 = vweird.f32 %v220
        %vm244 = vweird.f32 %v238
        %vm245 = vmor %vm243, %vm244
        %v246 = vsel %vm245, %v238, %v242
        %v247 = vand.u32 2147483647, %v220
        %vm248 = vcmp.eq.f32.partialorder %v247, 8.507059e+37
        %v249 = vand.u32 %v220, 2147483648
        %v250 = vor.u32 1.1754944e-38, %v249
        %v251 = vsel %vm248, %v250, %v246
        %v252 = vmul.f32 1.0, %v251
        %v253 = vrcp.pop %v221
        %v254 = vmul.f32 %v221, %v253
        %v255 = vsub.f32 1.0, %v254
        %v256 = vmul.f32 %v253, %v255
        %v257 = vadd.f32 %v253, %v256
        %vm258 = vweird.f32 %v221
        %vm259 = vweird.f32 %v253
        %vm260 = vmor %vm258, %vm259
        %v261 = vsel %vm260, %v253, %v257
        %v262 = vand.u32 2147483647, %v221
        %vm263 = vcmp.eq.f32.partialorder %v262, 8.507059e+37
        %v264 = vand.u32 %v221, 2147483648
        %v265 = vor.u32 1.1754944e-38, %v264
        %v266 = vsel %vm263, %v265, %v261
        %v267 = vmul.f32 1.0, %v266
        %v268 = vrcp.pop %v222
        %v269 = vmul.f32 %v222, %v268
        %v270 = vsub.f32 1.0, %v269
        %v271 = vmul.f32 %v268, %v270
        %v272 = vadd.f32 %v268, %v271
        %vm273 = vweird.f32 %v222
        %vm274 = vweird.f32 %v268
        %vm275 = vmor %vm273, %vm274
        %v276 = vsel %vm275, %v268, %v272
        %v277 = vand.u32 2147483647, %v222
        %vm278 = vcmp.eq.f32.partialorder %v277, 8.507059e+37
        %v279 = vand.u32 %v222, 2147483648
        %v280 = vor.u32 1.1754944e-38, %v279
        %v281 = vsel %vm278, %v280, %v276
        %v282 = vmul.f32 1.0, %v281
        %v283 = vadd.f32 %v237, 1e-05
        %v284 = vadd.f32 %v252, 1e-05
        %v285 = vadd.f32 %v267, 1e-05
        %v286 = vadd.f32 %v282, 1e-05
        %v287 = vmul.f32 %v283, 1.0986123
        %v288 = vmul.f32 %v284, 1.0986123
        %v289 = vmul.f32 %v285, 1.0986123
        %v290 = vmul.f32 %v286, 1.0986123
        %v291 = vmul.f32 %v287, 1.442695
        %v292 = vpow.pop %v291
        %v293 = vmul.f32 %v288, 1.442695
        %v294 = vpow.pop %v293
        %v295 = vmul.f32 %v289, 1.442695
        %v296 = vpow.pop %v295
        %v297 = vmul.f32 %v290, 1.442695
        %v298 = vpow.pop %v297
        %v299 = vsub.f32 %v292, 1.0
        %v300 = vsub.f32 %v294, 1.0
        %v301 = vsub.f32 %v296, 1.0
        %v302 = vsub.f32 %v298, 1.0
        %v303 = vrcp.pop %v299
        %v304 = vmul.f32 %v299, %v303
        %v305 = vsub.f32 1.0, %v304
        %v306 = vmul.f32 %v303, %v305
        %v307 = vadd.f32 %v303, %v306
        %vm308 = vweird.f32 %v299
        %vm309 = vweird.f32 %v303
        %vm310 = vmor %vm308, %vm309
        %v311 = vsel %vm310, %v303, %v307
        %v312 = vand.u32 2147483647, %v299
        %vm313 = vcmp.eq.f32.partialorder %v312, 8.507059e+37
        %v314 = vand.u32 %v299, 2147483648
        %v315 = vor.u32 1.1754944e-38, %v314
        %v316 = vsel %vm313, %v315, %v311
        %v317 = vrcp.pop %v300
        %v318 = vmul.f32 %v300, %v317
        %v319 = vsub.f32 1.0, %v318
        %v320 = vmul.f32 %v317, %v319
        %v321 = vadd.f32 %v317, %v320
        %vm322 = vweird.f32 %v300
        %vm323 = vweird.f32 %v317
        %vm324 = vmor %vm322, %vm323
        %v325 = vsel %vm324, %v317, %v321
        %v326 = vand.u32 2147483647, %v300
        %vm327 = vcmp.eq.f32.partialorder %v326, 8.507059e+37
        %v328 = vand.u32 %v300, 2147483648
        %v329 = vor.u32 1.1754944e-38, %v328
        %v330 = vsel %vm327, %v329, %v325
        %v331 = vrcp.pop %v301
        %v332 = vmul.f32 %v301, %v331
        %v333 = vsub.f32 1.0, %v332
        %v334 = vmul.f32 %v331, %v333
        %v335 = vadd.f32 %v331, %v334
        %vm336 = vweird.f32 %v301
        %vm337 = vweird.f32 %v331
        %vm338 = vmor %vm336, %vm337
        %v339 = vsel %vm338, %v331, %v335
        %v340 = vand.u32 2147483647, %v301
        %vm341 = vcmp.eq.f32.partialorder %v340, 8.507059e+37
        %v342 = vand.u32 %v301, 2147483648
        %v343 = vor.u32 1.1754944e-38, %v342
        %v344 = vsel %vm341, %v343, %v339
        %v345 = vrcp.pop %v302
        %v346 = vmul.f32 %v302, %v345
        %v347 = vsub.f32 1.0, %v346
        %v348 = vmul.f32 %v345, %v347
        %v349 = vadd.f32 %v345, %v348
        %vm350 = vweird.f32 %v302
        %vm351 = vweird.f32 %v345
        %vm352 = vmor %vm350, %vm351
        %v353 = vsel %vm352, %v345, %v349
        %v354 = vand.u32 2147483647, %v302
        %vm355 = vcmp.eq.f32.partialorder %v354, 8.507059e+37
        %v356 = vand.u32 %v302, 2147483648
        %v357 = vor.u32 1.1754944e-38, %v356
        %v358 = vsel %vm355, %v357, %v353
        %v359 = vmul.f32 %v316, %v316
        %v360 = vmul.f32 %v330, %v330
        %v361 = vmul.f32 %v344, %v344
        %v362 = vmul.f32 %v358, %v358
        %v363 = vld [vmem:[%s2] sm:$0xff]
        %v364 = vld [vmem:[%s2 + $0x8] sm:$0xff]
        %v365 = vld [vmem:[%s2 + $0x10] sm:$0xff]
        %v366 = vld [vmem:[%s2 + $0x18] sm:$0xff]
        %vm367 = vcmask 130048
        %v369 = vsel %vm367, %v359, 0
        %v372 = vsel %vm367, %v360, 0
        %v375 = vsel %vm367, %v361, 0
        %v378 = vsel %vm367, %v362, 0
        %380 = vmatpush.msra.mxu0 0.0
        %381 = vmatpush.msra.mxu0 0.0
        %382 = vmatpush.msra.mxu0 0.0
        %383 = vmatpush.msra.mxu0 0.0
        %384 = vmatpush.msra.mxu0 0.0
        %385 = vmatpush.msra.mxu0 0.0
        %386 = vmatpush.msra.mxu0 0.0
        %387 = vmatpush.msra.mxu0 0.0
        %388 = vmatpush.msra.mxu0 0.0
        %389 = vmatpush.msra.mxu0 0.0
        %390 = vmatpush.msra.mxu0 0.0
        %391 = vmatpush.msra.mxu0 0.0
        %392 = vmatpush.msra.mxu0 0.0
        %393 = vmatpush.msra.mxu0 0.0
        %v394 = vand.u32 %v365, 4294901760
        %395 = vmatpush.msra.mxu0 %v394
        %v396 = vand.u32 %v363, 4294901760
        %397 = vmatpush.msra.mxu0 %v396
        %v398 = vand.u32 %v369, 4294901760
        %v399 = vsub.f32 %v369, %v398
        %v400 = vand.u32 %v399, 4294901760
        %v401 = vsub.f32 %v399, %v400
        %v402 = vand.u32 %v401, 4294901760
        %403 = vmatmul.f32.gmra.mxu0 %v402
        %v404 = vpop.f32.mrf.mxu0
        %v405 = vadd.f32 0.0, %v404
        %v406 = vand.u32 %v372, 4294901760
        %v407 = vsub.f32 %v372, %v406
        %v408 = vand.u32 %v407, 4294901760
        %v409 = vsub.f32 %v407, %v408
        %v410 = vand.u32 %v409, 4294901760
        %411 = vmatmul.f32.gmra.mxu0 %v410
        %v412 = vpop.f32.mrf.mxu0
        %v413 = vadd.f32 0.0, %v412
        %v414 = vand.u32 %v375, 4294901760
        %v415 = vsub.f32 %v375, %v414
        %v416 = vand.u32 %v415, 4294901760
        %v417 = vsub.f32 %v415, %v416
        %v418 = vand.u32 %v417, 4294901760
        %419 = vmatmul.f32.gmra.mxu0 %v418
        %v420 = vpop.f32.mrf.mxu0
        %v421 = vadd.f32 0.0, %v420
        %v422 = vand.u32 %v378, 4294901760
        %v423 = vsub.f32 %v378, %v422
        %v424 = vand.u32 %v423, 4294901760
        %v425 = vsub.f32 %v423, %v424
        %v426 = vand.u32 %v425, 4294901760
        %427 = vmatmul.f32.gmra.mxu0 %v426
        %v428 = vpop.f32.mrf.mxu0
        %v429 = vadd.f32 0.0, %v428
        %430 = vdwg.mxu0
        %431 = vmatpush.msra.mxu0 0.0
        %432 = vmatpush.msra.mxu0 0.0
        %433 = vmatpush.msra.mxu0 0.0
        %434 = vmatpush.msra.mxu0 0.0
        %435 = vmatpush.msra.mxu0 0.0
        %436 = vmatpush.msra.mxu0 0.0
        %437 = vmatpush.msra.mxu0 0.0
        %438 = vmatpush.msra.mxu0 0.0
        %439 = vmatpush.msra.mxu0 0.0
        %440 = vmatpush.msra.mxu0 0.0
        %441 = vmatpush.msra.mxu0 0.0
        %442 = vmatpush.msra.mxu0 0.0
        %443 = vmatpush.msra.mxu0 0.0
        %444 = vmatpush.msra.mxu0 0.0
        %v445 = vand.u32 %v365, 4294901760
        %v446 = vsub.f32 %v365, %v445
        %v447 = vand.u32 %v446, 4294901760
        %v448 = vsub.f32 %v446, %v447
        %v449 = vand.u32 %v448, 4294901760
        %450 = vmatpush.msra.mxu0 %v449
        %v451 = vand.u32 %v363, 4294901760
        %v452 = vsub.f32 %v363, %v451
        %v453 = vand.u32 %v452, 4294901760
        %v454 = vsub.f32 %v452, %v453
        %v455 = vand.u32 %v454, 4294901760
        %456 = vmatpush.msra.mxu0 %v455
        %v457 = vand.u32 %v369, 4294901760
        %458 = vmatmul.f32.gmra.mxu0 %v457
        %v459 = vpop.f32.mrf.mxu0
        %v460 = vadd.f32 %v405, %v459
        %v461 = vand.u32 %v372, 4294901760
        %462 = vmatmul.f32.gmra.mxu0 %v461
        %v463 = vpop.f32.mrf.mxu0
        %v464 = vadd.f32 %v413, %v463
        %v465 = vand.u32 %v375, 4294901760
        %466 = vmatmul.f32.gmra.mxu0 %v465
        %v467 = vpop.f32.mrf.mxu0
        %v468 = vadd.f32 %v421, %v467
        %v469 = vand.u32 %v378, 4294901760
        %470 = vmatmul.f32.gmra.mxu0 %v469
        %v471 = vpop.f32.mrf.mxu0
        %v472 = vadd.f32 %v429, %v471
        %473 = vdwg.mxu0
        %474 = vmatpush.msra.mxu0 0.0
        %475 = vmatpush.msra.mxu0 0.0
        %476 = vmatpush.msra.mxu0 0.0
        %477 = vmatpush.msra.mxu0 0.0
        %478 = vmatpush.msra.mxu0 0.0
        %479 = vmatpush.msra.mxu0 0.0
        %480 = vmatpush.msra.mxu0 0.0
        %481 = vmatpush.msra.mxu0 0.0
        %482 = vmatpush.msra.mxu0 0.0
        %483 = vmatpush.msra.mxu0 0.0
        %484 = vmatpush.msra.mxu0 0.0
        %485 = vmatpush.msra.mxu0 0.0
        %486 = vmatpush.msra.mxu0 0.0
        %487 = vmatpush.msra.mxu0 0.0
        %v488 = vand.u32 %v365, 4294901760
        %v489 = vsub.f32 %v365, %v488
        %490 = vmatpush.msra.mxu0 %v489
        %v491 = vand.u32 %v363, 4294901760
        %v492 = vsub.f32 %v363, %v491
        %493 = vmatpush.msra.mxu0 %v492
        %v494 = vand.u32 %v369, 4294901760
        %v495 = vsub.f32 %v369, %v494
        %496 = vmatmul.f32.gmra.mxu0 %v495
        %v497 = vpop.f32.mrf.mxu0
        %v498 = vadd.f32 %v460, %v497
        %v499 = vand.u32 %v372, 4294901760
        %v500 = vsub.f32 %v372, %v499
        %501 = vmatmul.f32.gmra.mxu0 %v500
        %v502 = vpop.f32.mrf.mxu0
        %v503 = vadd.f32 %v464, %v502
        %v504 = vand.u32 %v375, 4294901760
        %v505 = vsub.f32 %v375, %v504
        %506 = vmatmul.f32.gmra.mxu0 %v505
        %v507 = vpop.f32.mrf.mxu0
        %v508 = vadd.f32 %v468, %v507
        %v509 = vand.u32 %v378, 4294901760
        %v510 = vsub.f32 %v378, %v509
        %511 = vmatmul.f32.gmra.mxu0 %v510
        %v512 = vpop.f32.mrf.mxu0
        %v513 = vadd.f32 %v472, %v512
        %514 = vdwg.mxu0
        %515 = vmatpush.msra.mxu0 0.0
        %516 = vmatpush.msra.mxu0 0.0
        %517 = vmatpush.msra.mxu0 0.0
        %518 = vmatpush.msra.mxu0 0.0
        %519 = vmatpush.msra.mxu0 0.0
        %520 = vmatpush.msra.mxu0 0.0
        %521 = vmatpush.msra.mxu0 0.0
        %522 = vmatpush.msra.mxu0 0.0
        %523 = vmatpush.msra.mxu0 0.0
        %524 = vmatpush.msra.mxu0 0.0
        %525 = vmatpush.msra.mxu0 0.0
        %526 = vmatpush.msra.mxu0 0.0
        %527 = vmatpush.msra.mxu0 0.0
        %528 = vmatpush.msra.mxu0 0.0
        %v529 = vand.u32 %v365, 4294901760
        %530 = vmatpush.msra.mxu0 %v529
        %v531 = vand.u32 %v363, 4294901760
        %532 = vmatpush.msra.mxu0 %v531
        %v533 = vand.u32 %v369, 4294901760
        %v534 = vsub.f32 %v369, %v533
        %v535 = vand.u32 %v534, 4294901760
        %536 = vmatmul.f32.gmra.mxu0 %v535
        %v537 = vpop.f32.mrf.mxu0
        %v538 = vadd.f32 %v498, %v537
        %v539 = vand.u32 %v372, 4294901760
        %v540 = vsub.f32 %v372, %v539
        %v541 = vand.u32 %v540, 4294901760
        %542 = vmatmul.f32.gmra.mxu0 %v541
        %v543 = vpop.f32.mrf.mxu0
        %v544 = vadd.f32 %v503, %v543
        %v545 = vand.u32 %v375, 4294901760
        %v546 = vsub.f32 %v375, %v545
        %v547 = vand.u32 %v546, 4294901760
        %548 = vmatmul.f32.gmra.mxu0 %v547
        %v549 = vpop.f32.mrf.mxu0
        %v550 = vadd.f32 %v508, %v549
        %v551 = vand.u32 %v378, 4294901760
        %v552 = vsub.f32 %v378, %v551
        %v553 = vand.u32 %v552, 4294901760
        %554 = vmatmul.f32.gmra.mxu0 %v553
        %v555 = vpop.f32.mrf.mxu0
        %v556 = vadd.f32 %v513, %v555
        %557 = vdwg.mxu0
        %558 = vmatpush.msra.mxu0 0.0
        %559 = vmatpush.msra.mxu0 0.0
        %560 = vmatpush.msra.mxu0 0.0
        %561 = vmatpush.msra.mxu0 0.0
        %562 = vmatpush.msra.mxu0 0.0
        %563 = vmatpush.msra.mxu0 0.0
        %564 = vmatpush.msra.mxu0 0.0
        %565 = vmatpush.msra.mxu0 0.0
        %566 = vmatpush.msra.mxu0 0.0
        %567 = vmatpush.msra.mxu0 0.0
        %568 = vmatpush.msra.mxu0 0.0
        %569 = vmatpush.msra.mxu0 0.0
        %570 = vmatpush.msra.mxu0 0.0
        %571 = vmatpush.msra.mxu0 0.0
        %v572 = vand.u32 %v365, 4294901760
        %v573 = vsub.f32 %v365, %v572
        %v574 = vand.u32 %v573, 4294901760
        %575 = vmatpush.msra.mxu0 %v574
        %v576 = vand.u32 %v363, 4294901760
        %v577 = vsub.f32 %v363, %v576
        %v578 = vand.u32 %v577, 4294901760
        %579 = vmatpush.msra.mxu0 %v578
        %v580 = vand.u32 %v369, 4294901760
        %581 = vmatmul.f32.gmra.mxu0 %v580
        %v582 = vpop.f32.mrf.mxu0
        %v583 = vadd.f32 %v538, %v582
        %v584 = vand.u32 %v372, 4294901760
        %585 = vmatmul.f32.gmra.mxu0 %v584
        %v586 = vpop.f32.mrf.mxu0
        %v587 = vadd.f32 %v544, %v586
        %v588 = vand.u32 %v375, 4294901760
        %589 = vmatmul.f32.gmra.mxu0 %v588
        %v590 = vpop.f32.mrf.mxu0
        %v591 = vadd.f32 %v550, %v590
        %v592 = vand.u32 %v378, 4294901760
        %593 = vmatmul.f32.gmra.mxu0 %v592
        %v594 = vpop.f32.mrf.mxu0
        %v595 = vadd.f32 %v556, %v594
        %596 = vdwg.mxu0
        %597 = vmatpush.msra.mxu0 0.0
        %598 = vmatpush.msra.mxu0 0.0
        %599 = vmatpush.msra.mxu0 0.0
        %600 = vmatpush.msra.mxu0 0.0
        %601 = vmatpush.msra.mxu0 0.0
        %602 = vmatpush.msra.mxu0 0.0
        %603 = vmatpush.msra.mxu0 0.0
        %604 = vmatpush.msra.mxu0 0.0
        %605 = vmatpush.msra.mxu0 0.0
        %606 = vmatpush.msra.mxu0 0.0
        %607 = vmatpush.msra.mxu0 0.0
        %608 = vmatpush.msra.mxu0 0.0
        %609 = vmatpush.msra.mxu0 0.0
        %610 = vmatpush.msra.mxu0 0.0
        %v611 = vand.u32 %v365, 4294901760
        %612 = vmatpush.msra.mxu0 %v611
        %v613 = vand.u32 %v363, 4294901760
        %614 = vmatpush.msra.mxu0 %v613
        %v615 = vand.u32 %v369, 4294901760
        %616 = vmatmul.f32.gmra.mxu0 %v615
        %v617 = vpop.f32.mrf.mxu0
        %v618 = vadd.f32 %v583, %v617
        %v619 = vand.u32 %v372, 4294901760
        %620 = vmatmul.f32.gmra.mxu0 %v619
        %v621 = vpop.f32.mrf.mxu0
        %v622 = vadd.f32 %v587, %v621
        %v623 = vand.u32 %v375, 4294901760
        %624 = vmatmul.f32.gmra.mxu0 %v623
        %v625 = vpop.f32.mrf.mxu0
        %v626 = vadd.f32 %v591, %v625
        %v627 = vand.u32 %v378, 4294901760
        %628 = vmatmul.f32.gmra.mxu0 %v627
        %v629 = vpop.f32.mrf.mxu0
        %v630 = vadd.f32 %v595, %v629
        %631 = vdwg.mxu0
        %632 = vmatpush.msra.mxu0 0.0
        %633 = vmatpush.msra.mxu0 0.0
        %634 = vmatpush.msra.mxu0 0.0
        %635 = vmatpush.msra.mxu0 0.0
        %636 = vmatpush.msra.mxu0 0.0
        %637 = vmatpush.msra.mxu0 0.0
        %638 = vmatpush.msra.mxu0 0.0
        %639 = vmatpush.msra.mxu0 0.0
        %640 = vmatpush.msra.mxu0 0.0
        %641 = vmatpush.msra.mxu0 0.0
        %642 = vmatpush.msra.mxu0 0.0
        %643 = vmatpush.msra.mxu0 0.0
        %644 = vmatpush.msra.mxu0 0.0
        %645 = vmatpush.msra.mxu0 0.0
        %v646 = vand.u32 %v366, 4294901760
        %647 = vmatpush.msra.mxu0 %v646
        %v648 = vand.u32 %v364, 4294901760
        %649 = vmatpush.msra.mxu0 %v648
        %v650 = vand.u32 %v369, 4294901760
        %v651 = vsub.f32 %v369, %v650
        %v652 = vand.u32 %v651, 4294901760
        %v653 = vsub.f32 %v651, %v652
        %v654 = vand.u32 %v653, 4294901760
        %655 = vmatmul.f32.gmra.mxu0 %v654
        %v656 = vpop.f32.mrf.mxu0
        %v657 = vadd.f32 0.0, %v656
        %v658 = vand.u32 %v372, 4294901760
        %v659 = vsub.f32 %v372, %v658
        %v660 = vand.u32 %v659, 4294901760
        %v661 = vsub.f32 %v659, %v660
        %v662 = vand.u32 %v661, 4294901760
        %663 = vmatmul.f32.gmra.mxu0 %v662
        %v664 = vpop.f32.mrf.mxu0
        %v665 = vadd.f32 0.0, %v664
        %v666 = vand.u32 %v375, 4294901760
        %v667 = vsub.f32 %v375, %v666
        %v668 = vand.u32 %v667, 4294901760
        %v669 = vsub.f32 %v667, %v668
        %v670 = vand.u32 %v669, 4294901760
        %671 = vmatmul.f32.gmra.mxu0 %v670
        %v672 = vpop.f32.mrf.mxu0
        %v673 = vadd.f32 0.0, %v672
        %v674 = vand.u32 %v378, 4294901760
        %v675 = vsub.f32 %v378, %v674
        %v676 = vand.u32 %v675, 4294901760
        %v677 = vsub.f32 %v675, %v676
        %v678 = vand.u32 %v677, 4294901760
        %679 = vmatmul.f32.gmra.mxu0 %v678
        %v680 = vpop.f32.mrf.mxu0
        %v681 = vadd.f32 0.0, %v680
        %682 = vdwg.mxu0
        %683 = vmatpush.msra.mxu0 0.0
        %684 = vmatpush.msra.mxu0 0.0
        %685 = vmatpush.msra.mxu0 0.0
        %686 = vmatpush.msra.mxu0 0.0
        %687 = vmatpush.msra.mxu0 0.0
        %688 = vmatpush.msra.mxu0 0.0
        %689 = vmatpush.msra.mxu0 0.0
        %690 = vmatpush.msra.mxu0 0.0
        %691 = vmatpush.msra.mxu0 0.0
        %692 = vmatpush.msra.mxu0 0.0
        %693 = vmatpush.msra.mxu0 0.0
        %694 = vmatpush.msra.mxu0 0.0
        %695 = vmatpush.msra.mxu0 0.0
        %696 = vmatpush.msra.mxu0 0.0
        %v697 = vand.u32 %v366, 4294901760
        %v698 = vsub.f32 %v366, %v697
        %v699 = vand.u32 %v698, 4294901760
        %v700 = vsub.f32 %v698, %v699
        %v701 = vand.u32 %v700, 4294901760
        %702 = vmatpush.msra.mxu0 %v701
        %v703 = vand.u32 %v364, 4294901760
        %v704 = vsub.f32 %v364, %v703
        %v705 = vand.u32 %v704, 4294901760
        %v706 = vsub.f32 %v704, %v705
        %v707 = vand.u32 %v706, 4294901760
        %708 = vmatpush.msra.mxu0 %v707
        %v709 = vand.u32 %v369, 4294901760
        %710 = vmatmul.f32.gmra.mxu0 %v709
        %v711 = vpop.f32.mrf.mxu0
        %v712 = vadd.f32 %v657, %v711
        %v713 = vand.u32 %v372, 4294901760
        %714 = vmatmul.f32.gmra.mxu0 %v713
        %v715 = vpop.f32.mrf.mxu0
        %v716 = vadd.f32 %v665, %v715
        %v717 = vand.u32 %v375, 4294901760
        %718 = vmatmul.f32.gmra.mxu0 %v717
        %v719 = vpop.f32.mrf.mxu0
        %v720 = vadd.f32 %v673, %v719
        %v721 = vand.u32 %v378, 4294901760
        %722 = vmatmul.f32.gmra.mxu0 %v721
        %v723 = vpop.f32.mrf.mxu0
        %v724 = vadd.f32 %v681, %v723
        %725 = vdwg.mxu0
        %726 = vmatpush.msra.mxu0 0.0
        %727 = vmatpush.msra.mxu0 0.0
        %728 = vmatpush.msra.mxu0 0.0
        %729 = vmatpush.msra.mxu0 0.0
        %730 = vmatpush.msra.mxu0 0.0
        %731 = vmatpush.msra.mxu0 0.0
        %732 = vmatpush.msra.mxu0 0.0
        %733 = vmatpush.msra.mxu0 0.0
        %734 = vmatpush.msra.mxu0 0.0
        %735 = vmatpush.msra.mxu0 0.0
        %736 = vmatpush.msra.mxu0 0.0
        %737 = vmatpush.msra.mxu0 0.0
        %738 = vmatpush.msra.mxu0 0.0
        %739 = vmatpush.msra.mxu0 0.0
        %v740 = vand.u32 %v366, 4294901760
        %v741 = vsub.f32 %v366, %v740
        %742 = vmatpush.msra.mxu0 %v741
        %v743 = vand.u32 %v364, 4294901760
        %v744 = vsub.f32 %v364, %v743
        %745 = vmatpush.msra.mxu0 %v744
        %v746 = vand.u32 %v369, 4294901760
        %v747 = vsub.f32 %v369, %v746
        %748 = vmatmul.f32.gmra.mxu0 %v747
        %v749 = vpop.f32.mrf.mxu0
        %v750 = vadd.f32 %v712, %v749
        %v751 = vand.u32 %v372, 4294901760
        %v752 = vsub.f32 %v372, %v751
        %753 = vmatmul.f32.gmra.mxu0 %v752
        %v754 = vpop.f32.mrf.mxu0
        %v755 = vadd.f32 %v716, %v754
        %v756 = vand.u32 %v375, 4294901760
        %v757 = vsub.f32 %v375, %v756
        %758 = vmatmul.f32.gmra.mxu0 %v757
        %v759 = vpop.f32.mrf.mxu0
        %v760 = vadd.f32 %v720, %v759
        %v761 = vand.u32 %v378, 4294901760
        %v762 = vsub.f32 %v378, %v761
        %763 = vmatmul.f32.gmra.mxu0 %v762
        %v764 = vpop.f32.mrf.mxu0
        %v765 = vadd.f32 %v724, %v764
        %766 = vdwg.mxu0
        %767 = vmatpush.msra.mxu0 0.0
        %768 = vmatpush.msra.mxu0 0.0
        %769 = vmatpush.msra.mxu0 0.0
        %770 = vmatpush.msra.mxu0 0.0
        %771 = vmatpush.msra.mxu0 0.0
        %772 = vmatpush.msra.mxu0 0.0
        %773 = vmatpush.msra.mxu0 0.0
        %774 = vmatpush.msra.mxu0 0.0
        %775 = vmatpush.msra.mxu0 0.0
        %776 = vmatpush.msra.mxu0 0.0
        %777 = vmatpush.msra.mxu0 0.0
        %778 = vmatpush.msra.mxu0 0.0
        %779 = vmatpush.msra.mxu0 0.0
        %780 = vmatpush.msra.mxu0 0.0
        %v781 = vand.u32 %v366, 4294901760
        %782 = vmatpush.msra.mxu0 %v781
        %v783 = vand.u32 %v364, 4294901760
        %784 = vmatpush.msra.mxu0 %v783
        %v785 = vand.u32 %v369, 4294901760
        %v786 = vsub.f32 %v369, %v785
        %v787 = vand.u32 %v786, 4294901760
        %788 = vmatmul.f32.gmra.mxu0 %v787
        %v789 = vpop.f32.mrf.mxu0
        %v790 = vadd.f32 %v750, %v789
        %v791 = vand.u32 %v372, 4294901760
        %v792 = vsub.f32 %v372, %v791
        %v793 = vand.u32 %v792, 4294901760
        %794 = vmatmul.f32.gmra.mxu0 %v793
        %v795 = vpop.f32.mrf.mxu0
        %v796 = vadd.f32 %v755, %v795
        %v797 = vand.u32 %v375, 4294901760
        %v798 = vsub.f32 %v375, %v797
        %v799 = vand.u32 %v798, 4294901760
        %800 = vmatmul.f32.gmra.mxu0 %v799
        %v801 = vpop.f32.mrf.mxu0
        %v802 = vadd.f32 %v760, %v801
        %v803 = vand.u32 %v378, 4294901760
        %v804 = vsub.f32 %v378, %v803
        %v805 = vand.u32 %v804, 4294901760
        %806 = vmatmul.f32.gmra.mxu0 %v805
        %v807 = vpop.f32.mrf.mxu0
        %v808 = vadd.f32 %v765, %v807
        %809 = vdwg.mxu0
        %810 = vmatpush.msra.mxu0 0.0
        %811 = vmatpush.msra.mxu0 0.0
        %812 = vmatpush.msra.mxu0 0.0
        %813 = vmatpush.msra.mxu0 0.0
        %814 = vmatpush.msra.mxu0 0.0
        %815 = vmatpush.msra.mxu0 0.0
        %816 = vmatpush.msra.mxu0 0.0
        %817 = vmatpush.msra.mxu0 0.0
        %818 = vmatpush.msra.mxu0 0.0
        %819 = vmatpush.msra.mxu0 0.0
        %820 = vmatpush.msra.mxu0 0.0
        %821 = vmatpush.msra.mxu0 0.0
        %822 = vmatpush.msra.mxu0 0.0
        %823 = vmatpush.msra.mxu0 0.0
        %v824 = vand.u32 %v366, 4294901760
        %v825 = vsub.f32 %v366, %v824
        %v826 = vand.u32 %v825, 4294901760
        %827 = vmatpush.msra.mxu0 %v826
        %v828 = vand.u32 %v364, 4294901760
        %v829 = vsub.f32 %v364, %v828
        %v830 = vand.u32 %v829, 4294901760
        %831 = vmatpush.msra.mxu0 %v830
        %v832 = vand.u32 %v369, 4294901760
        %833 = vmatmul.f32.gmra.mxu0 %v832
        %v834 = vpop.f32.mrf.mxu0
        %v835 = vadd.f32 %v790, %v834
        %v836 = vand.u32 %v372, 4294901760
        %837 = vmatmul.f32.gmra.mxu0 %v836
        %v838 = vpop.f32.mrf.mxu0
        %v839 = vadd.f32 %v796, %v838
        %v840 = vand.u32 %v375, 4294901760
        %841 = vmatmul.f32.gmra.mxu0 %v840
        %v842 = vpop.f32.mrf.mxu0
        %v843 = vadd.f32 %v802, %v842
        %v844 = vand.u32 %v378, 4294901760
        %845 = vmatmul.f32.gmra.mxu0 %v844
        %v846 = vpop.f32.mrf.mxu0
        %v847 = vadd.f32 %v808, %v846
        %848 = vdwg.mxu0
        %849 = vmatpush.msra.mxu0 0.0
        %850 = vmatpush.msra.mxu0 0.0
        %851 = vmatpush.msra.mxu0 0.0
        %852 = vmatpush.msra.mxu0 0.0
        %853 = vmatpush.msra.mxu0 0.0
        %854 = vmatpush.msra.mxu0 0.0
        %855 = vmatpush.msra.mxu0 0.0
        %856 = vmatpush.msra.mxu0 0.0
        %857 = vmatpush.msra.mxu0 0.0
        %858 = vmatpush.msra.mxu0 0.0
        %859 = vmatpush.msra.mxu0 0.0
        %860 = vmatpush.msra.mxu0 0.0
        %861 = vmatpush.msra.mxu0 0.0
        %862 = vmatpush.msra.mxu0 0.0
        %v863 = vand.u32 %v366, 4294901760
        %864 = vmatpush.msra.mxu0 %v863
        %v865 = vand.u32 %v364, 4294901760
        %866 = vmatpush.msra.mxu0 %v865
        %v867 = vand.u32 %v369, 4294901760
        %868 = vmatmul.f32.gmra.mxu0 %v867
        %v869 = vpop.f32.mrf.mxu0
        %v870 = vadd.f32 %v835, %v869
        %v871 = vand.u32 %v372, 4294901760
        %872 = vmatmul.f32.gmra.mxu0 %v871
        %v873 = vpop.f32.mrf.mxu0
        %v874 = vadd.f32 %v839, %v873
        %v875 = vand.u32 %v375, 4294901760
        %876 = vmatmul.f32.gmra.mxu0 %v875
        %v877 = vpop.f32.mrf.mxu0
        %v878 = vadd.f32 %v843, %v877
        %v879 = vand.u32 %v378, 4294901760
        %880 = vmatmul.f32.gmra.mxu0 %v879
        %v881 = vpop.f32.mrf.mxu0
        %v882 = vadd.f32 %v847, %v881
        %883 = vdwg.mxu0
        %v884 = vld [vmem:[%s1] sm:$0x3]
        %v886 = vperm.slane %v884, 0
        %v887 = vperm.slane %v884, 1
        %v890 = vmul.f32 %v886, %v618
        %v891 = vmul.f32 %v887, %v870
        %v892 = vmul.f32 %v886, %v622
        %v893 = vmul.f32 %v887, %v874
        %v894 = vmul.f32 %v886, %v626
        %v895 = vmul.f32 %v887, %v878
        %v896 = vmul.f32 %v886, %v630
        %v897 = vmul.f32 %v887, %v882
        %v898 = vmul.f32 %v890, 1.442695
        %v899 = vpow.pop %v898
        %v900 = vmul.f32 %v891, 1.442695
        %v901 = vpow.pop %v900
        %v902 = vmul.f32 %v892, 1.442695
        %v903 = vpow.pop %v902
        %v904 = vmul.f32 %v893, 1.442695
        %v905 = vpow.pop %v904
        %v906 = vmul.f32 %v894, 1.442695
        %v907 = vpow.pop %v906
        %v908 = vmul.f32 %v895, 1.442695
        %v909 = vpow.pop %v908
        %v910 = vmul.f32 %v896, 1.442695
        %v911 = vpow.pop %v910
        %v912 = vmul.f32 %v897, 1.442695
        %v913 = vpow.pop %v912
        %v914 = vld [vmem:[%s3] sm:$0xff]
        %v915 = vld [vmem:[%s3 + $0x8] sm:$0xff]
        %v916 = vld [vmem:[%s3 + $0x10] sm:$0xff]
        %v917 = vld [vmem:[%s3 + $0x18] sm:$0xff]
        %v918 = vld [vmem:[%s3 + $0x20] sm:$0xff]
        %v919 = vld [vmem:[%s3 + $0x28] sm:$0xff]
        %v920 = vld [vmem:[%s3 + $0x30] sm:$0xff]
        %v921 = vld [vmem:[%s3 + $0x38] sm:$0xff]
        %v922 = vld [vmem:[%s3 + $0x40] sm:$0xff]
        %v923 = vld [vmem:[%s3 + $0x48] sm:$0xff]
        %v924 = vld [vmem:[%s3 + $0x50] sm:$0xff]
        %v925 = vld [vmem:[%s3 + $0x58] sm:$0xff]
        %v926 = vld [vmem:[%s3 + $0x60] sm:$0xff]
        %v927 = vld [vmem:[%s3 + $0x68] sm:$0xff]
        %v928 = vld [vmem:[%s3 + $0x70] sm:$0xff]
        %v929 = vld [vmem:[%s3 + $0x78] sm:$0xff]
        %v930 = vld [vmem:[%s3 + $0x80] sm:$0xff]
        %v931 = vld [vmem:[%s3 + $0x88] sm:$0xff]
        %v932 = vld [vmem:[%s3 + $0x90] sm:$0xff]
        %v933 = vld [vmem:[%s3 + $0x98] sm:$0xff]
        %v934 = vld [vmem:[%s3 + $0xa0] sm:$0xff]
        %v935 = vld [vmem:[%s3 + $0xa8] sm:$0xff]
        %v936 = vld [vmem:[%s3 + $0xb0] sm:$0xff]
        %v937 = vld [vmem:[%s3 + $0xb8] sm:$0xff]
        %v938 = vld [vmem:[%s3 + $0xc0] sm:$0xff]
        %v939 = vld [vmem:[%s3 + $0xc8] sm:$0xff]
        %v940 = vld [vmem:[%s3 + $0xd0] sm:$0xff]
        %v941 = vld [vmem:[%s3 + $0xd8] sm:$0xff]
        %v942 = vld [vmem:[%s3 + $0xe0] sm:$0xff]
        %v943 = vld [vmem:[%s3 + $0xe8] sm:$0xff]
        %v944 = vld [vmem:[%s3 + $0xf0] sm:$0xff]
        %v945 = vld [vmem:[%s3 + $0xf8] sm:$0xff]
        %v946 = vand.u32 %v929, 4294901760
        %947 = vmatpush.msra.mxu0 %v946
        %v948 = vand.u32 %v928, 4294901760
        %949 = vmatpush.msra.mxu0 %v948
        %v950 = vand.u32 %v927, 4294901760
        %951 = vmatpush.msra.mxu0 %v950
        %v952 = vand.u32 %v926, 4294901760
        %953 = vmatpush.msra.mxu0 %v952
        %v954 = vand.u32 %v925, 4294901760
        %955 = vmatpush.msra.mxu0 %v954
        %v956 = vand.u32 %v924, 4294901760
        %957 = vmatpush.msra.mxu0 %v956
        %v958 = vand.u32 %v923, 4294901760
        %959 = vmatpush.msra.mxu0 %v958
        %v960 = vand.u32 %v922, 4294901760
        %961 = vmatpush.msra.mxu0 %v960
        %v962 = vand.u32 %v921, 4294901760
        %963 = vmatpush.msra.mxu0 %v962
        %v964 = vand.u32 %v920, 4294901760
        %965 = vmatpush.msra.mxu0 %v964
        %v966 = vand.u32 %v919, 4294901760
        %967 = vmatpush.msra.mxu0 %v966
        %v968 = vand.u32 %v918, 4294901760
        %969 = vmatpush.msra.mxu0 %v968
        %v970 = vand.u32 %v917, 4294901760
        %971 = vmatpush.msra.mxu0 %v970
        %v972 = vand.u32 %v916, 4294901760
        %973 = vmatpush.msra.mxu0 %v972
        %v974 = vand.u32 %v915, 4294901760
        %975 = vmatpush.msra.mxu0 %v974
        %v976 = vand.u32 %v914, 4294901760
        %977 = vmatpush.msra.mxu0 %v976
        %v978 = vand.u32 %v899, 4294901760
        %v979 = vsub.f32 %v899, %v978
        %v980 = vand.u32 %v979, 4294901760
        %v981 = vsub.f32 %v979, %v980
        %v982 = vand.u32 %v981, 4294901760
        %983 = vmatmul.f32.gmra.mxu0 %v982
        %v984 = vpop.f32.mrf.mxu0
        %v985 = vadd.f32 0.0, %v984
        %v986 = vand.u32 %v903, 4294901760
        %v987 = vsub.f32 %v903, %v986
        %v988 = vand.u32 %v987, 4294901760
        %v989 = vsub.f32 %v987, %v988
        %v990 = vand.u32 %v989, 4294901760
        %991 = vmatmul.f32.gmra.mxu0 %v990
        %v992 = vpop.f32.mrf.mxu0
        %v993 = vadd.f32 0.0, %v992
        %v994 = vand.u32 %v907, 4294901760
        %v995 = vsub.f32 %v907, %v994
        %v996 = vand.u32 %v995, 4294901760
        %v997 = vsub.f32 %v995, %v996
        %v998 = vand.u32 %v997, 4294901760
        %999 = vmatmul.f32.gmra.mxu0 %v998
        %v1000 = vpop.f32.mrf.mxu0
        %v1001 = vadd.f32 0.0, %v1000
        %v1002 = vand.u32 %v911, 4294901760
        %v1003 = vsub.f32 %v911, %v1002
        %v1004 = vand.u32 %v1003, 4294901760
        %v1005 = vsub.f32 %v1003, %v1004
        %v1006 = vand.u32 %v1005, 4294901760
        %1007 = vmatmul.f32.gmra.mxu0 %v1006
        %v1008 = vpop.f32.mrf.mxu0
        %v1009 = vadd.f32 0.0, %v1008
        %1010 = vdwg.mxu0
        %v1011 = vand.u32 %v929, 4294901760
        %v1012 = vsub.f32 %v929, %v1011
        %v1013 = vand.u32 %v1012, 4294901760
        %v1014 = vsub.f32 %v1012, %v1013
        %v1015 = vand.u32 %v1014, 4294901760
        %1016 = vmatpush.msra.mxu0 %v1015
        %v1017 = vand.u32 %v928, 4294901760
        %v1018 = vsub.f32 %v928, %v1017
        %v1019 = vand.u32 %v1018, 4294901760
        %v1020 = vsub.f32 %v1018, %v1019
        %v1021 = vand.u32 %v1020, 4294901760
        %1022 = vmatpush.msra.mxu0 %v1021
        %v1023 = vand.u32 %v927, 4294901760
        %v1024 = vsub.f32 %v927, %v1023
        %v1025 = vand.u32 %v1024, 4294901760
        %v1026 = vsub.f32 %v1024, %v1025
        %v1027 = vand.u32 %v1026, 4294901760
        %1028 = vmatpush.msra.mxu0 %v1027
        %v1029 = vand.u32 %v926, 4294901760
        %v1030 = vsub.f32 %v926, %v1029
        %v1031 = vand.u32 %v1030, 4294901760
        %v1032 = vsub.f32 %v1030, %v1031
        %v1033 = vand.u32 %v1032, 4294901760
        %1034 = vmatpush.msra.mxu0 %v1033
        %v1035 = vand.u32 %v925, 4294901760
        %v1036 = vsub.f32 %v925, %v1035
        %v1037 = vand.u32 %v1036, 4294901760
        %v1038 = vsub.f32 %v1036, %v1037
        %v1039 = vand.u32 %v1038, 4294901760
        %1040 = vmatpush.msra.mxu0 %v1039
        %v1041 = vand.u32 %v924, 4294901760
        %v1042 = vsub.f32 %v924, %v1041
        %v1043 = vand.u32 %v1042, 4294901760
        %v1044 = vsub.f32 %v1042, %v1043
        %v1045 = vand.u32 %v1044, 4294901760
        %1046 = vmatpush.msra.mxu0 %v1045
        %v1047 = vand.u32 %v923, 4294901760
        %v1048 = vsub.f32 %v923, %v1047
        %v1049 = vand.u32 %v1048, 4294901760
        %v1050 = vsub.f32 %v1048, %v1049
        %v1051 = vand.u32 %v1050, 4294901760
        %1052 = vmatpush.msra.mxu0 %v1051
        %v1053 = vand.u32 %v922, 4294901760
        %v1054 = vsub.f32 %v922, %v1053
        %v1055 = vand.u32 %v1054, 4294901760
        %v1056 = vsub.f32 %v1054, %v1055
        %v1057 = vand.u32 %v1056, 4294901760
        %1058 = vmatpush.msra.mxu0 %v1057
        %v1059 = vand.u32 %v921, 4294901760
        %v1060 = vsub.f32 %v921, %v1059
        %v1061 = vand.u32 %v1060, 4294901760
        %v1062 = vsub.f32 %v1060, %v1061
        %v1063 = vand.u32 %v1062, 4294901760
        %1064 = vmatpush.msra.mxu0 %v1063
        %v1065 = vand.u32 %v920, 4294901760
        %v1066 = vsub.f32 %v920, %v1065
        %v1067 = vand.u32 %v1066, 4294901760
        %v1068 = vsub.f32 %v1066, %v1067
        %v1069 = vand.u32 %v1068, 4294901760
        %1070 = vmatpush.msra.mxu0 %v1069
        %v1071 = vand.u32 %v919, 4294901760
        %v1072 = vsub.f32 %v919, %v1071
        %v1073 = vand.u32 %v1072, 4294901760
        %v1074 = vsub.f32 %v1072, %v1073
        %v1075 = vand.u32 %v1074, 4294901760
        %1076 = vmatpush.msra.mxu0 %v1075
        %v1077 = vand.u32 %v918, 4294901760
        %v1078 = vsub.f32 %v918, %v1077
        %v1079 = vand.u32 %v1078, 4294901760
        %v1080 = vsub.f32 %v1078, %v1079
        %v1081 = vand.u32 %v1080, 4294901760
        %1082 = vmatpush.msra.mxu0 %v1081
        %v1083 = vand.u32 %v917, 4294901760
        %v1084 = vsub.f32 %v917, %v1083
        %v1085 = vand.u32 %v1084, 4294901760
        %v1086 = vsub.f32 %v1084, %v1085
        %v1087 = vand.u32 %v1086, 4294901760
        %1088 = vmatpush.msra.mxu0 %v1087
        %v1089 = vand.u32 %v916, 4294901760
        %v1090 = vsub.f32 %v916, %v1089
        %v1091 = vand.u32 %v1090, 4294901760
        %v1092 = vsub.f32 %v1090, %v1091
        %v1093 = vand.u32 %v1092, 4294901760
        %1094 = vmatpush.msra.mxu0 %v1093
        %v1095 = vand.u32 %v915, 4294901760
        %v1096 = vsub.f32 %v915, %v1095
        %v1097 = vand.u32 %v1096, 4294901760
        %v1098 = vsub.f32 %v1096, %v1097
        %v1099 = vand.u32 %v1098, 4294901760
        %1100 = vmatpush.msra.mxu0 %v1099
        %v1101 = vand.u32 %v914, 4294901760
        %v1102 = vsub.f32 %v914, %v1101
        %v1103 = vand.u32 %v1102, 4294901760
        %v1104 = vsub.f32 %v1102, %v1103
        %v1105 = vand.u32 %v1104, 4294901760
        %1106 = vmatpush.msra.mxu0 %v1105
        %v1107 = vand.u32 %v899, 4294901760
        %1108 = vmatmul.f32.gmra.mxu0 %v1107
        %v1109 = vpop.f32.mrf.mxu0
        %v1110 = vadd.f32 %v985, %v1109
        %v1111 = vand.u32 %v903, 4294901760
        %1112 = vmatmul.f32.gmra.mxu0 %v1111
        %v1113 = vpop.f32.mrf.mxu0
        %v1114 = vadd.f32 %v993, %v1113
        %v1115 = vand.u32 %v907, 4294901760
        %1116 = vmatmul.f32.gmra.mxu0 %v1115
        %v1117 = vpop.f32.mrf.mxu0
        %v1118 = vadd.f32 %v1001, %v1117
        %v1119 = vand.u32 %v911, 4294901760
        %1120 = vmatmul.f32.gmra.mxu0 %v1119
        %v1121 = vpop.f32.mrf.mxu0
        %v1122 = vadd.f32 %v1009, %v1121
        %1123 = vdwg.mxu0
        %v1124 = vand.u32 %v929, 4294901760
        %v1125 = vsub.f32 %v929, %v1124
        %1126 = vmatpush.msra.mxu0 %v1125
        %v1127 = vand.u32 %v928, 4294901760
        %v1128 = vsub.f32 %v928, %v1127
        %1129 = vmatpush.msra.mxu0 %v1128
        %v1130 = vand.u32 %v927, 4294901760
        %v1131 = vsub.f32 %v927, %v1130
        %1132 = vmatpush.msra.mxu0 %v1131
        %v1133 = vand.u32 %v926, 4294901760
        %v1134 = vsub.f32 %v926, %v1133
        %1135 = vmatpush.msra.mxu0 %v1134
        %v1136 = vand.u32 %v925, 4294901760
        %v1137 = vsub.f32 %v925, %v1136
        %1138 = vmatpush.msra.mxu0 %v1137
        %v1139 = vand.u32 %v924, 4294901760
        %v1140 = vsub.f32 %v924, %v1139
        %1141 = vmatpush.msra.mxu0 %v1140
        %v1142 = vand.u32 %v923, 4294901760
        %v1143 = vsub.f32 %v923, %v1142
        %1144 = vmatpush.msra.mxu0 %v1143
        %v1145 = vand.u32 %v922, 4294901760
        %v1146 = vsub.f32 %v922, %v1145
        %1147 = vmatpush.msra.mxu0 %v1146
        %v1148 = vand.u32 %v921, 4294901760
        %v1149 = vsub.f32 %v921, %v1148
        %1150 = vmatpush.msra.mxu0 %v1149
        %v1151 = vand.u32 %v920, 4294901760
        %v1152 = vsub.f32 %v920, %v1151
        %1153 = vmatpush.msra.mxu0 %v1152
        %v1154 = vand.u32 %v919, 4294901760
        %v1155 = vsub.f32 %v919, %v1154
        %1156 = vmatpush.msra.mxu0 %v1155
        %v1157 = vand.u32 %v918, 4294901760
        %v1158 = vsub.f32 %v918, %v1157
        %1159 = vmatpush.msra.mxu0 %v1158
        %v1160 = vand.u32 %v917, 4294901760
        %v1161 = vsub.f32 %v917, %v1160
        %1162 = vmatpush.msra.mxu0 %v1161
        %v1163 = vand.u32 %v916, 4294901760
        %v1164 = vsub.f32 %v916, %v1163
        %1165 = vmatpush.msra.mxu0 %v1164
        %v1166 = vand.u32 %v915, 4294901760
        %v1167 = vsub.f32 %v915, %v1166
        %1168 = vmatpush.msra.mxu0 %v1167
        %v1169 = vand.u32 %v914, 4294901760
        %v1170 = vsub.f32 %v914, %v1169
        %1171 = vmatpush.msra.mxu0 %v1170
        %v1172 = vand.u32 %v899, 4294901760
        %v1173 = vsub.f32 %v899, %v1172
        %1174 = vmatmul.f32.gmra.mxu0 %v1173
        %v1175 = vpop.f32.mrf.mxu0
        %v1176 = vadd.f32 %v1110, %v1175
        %v1177 = vand.u32 %v903, 4294901760
        %v1178 = vsub.f32 %v903, %v1177
        %1179 = vmatmul.f32.gmra.mxu0 %v1178
        %v1180 = vpop.f32.mrf.mxu0
        %v1181 = vadd.f32 %v1114, %v1180
        %v1182 = vand.u32 %v907, 4294901760
        %v1183 = vsub.f32 %v907, %v1182
        %1184 = vmatmul.f32.gmra.mxu0 %v1183
        %v1185 = vpop.f32.mrf.mxu0
        %v1186 = vadd.f32 %v1118, %v1185
        %v1187 = vand.u32 %v911, 4294901760
        %v1188 = vsub.f32 %v911, %v1187
        %1189 = vmatmul.f32.gmra.mxu0 %v1188
        %v1190 = vpop.f32.mrf.mxu0
        %v1191 = vadd.f32 %v1122, %v1190
        %1192 = vdwg.mxu0
        %v1193 = vand.u32 %v929, 4294901760
        %1194 = vmatpush.msra.mxu0 %v1193
        %v1195 = vand.u32 %v928, 4294901760
        %1196 = vmatpush.msra.mxu0 %v1195
        %v1197 = vand.u32 %v927, 4294901760
        %1198 = vmatpush.msra.mxu0 %v1197
        %v1199 = vand.u32 %v926, 4294901760
        %1200 = vmatpush.msra.mxu0 %v1199
        %v1201 = vand.u32 %v925, 4294901760
        %1202 = vmatpush.msra.mxu0 %v1201
        %v1203 = vand.u32 %v924, 4294901760
        %1204 = vmatpush.msra.mxu0 %v1203
        %v1205 = vand.u32 %v923, 4294901760
        %1206 = vmatpush.msra.mxu0 %v1205
        %v1207 = vand.u32 %v922, 4294901760
        %1208 = vmatpush.msra.mxu0 %v1207
        %v1209 = vand.u32 %v921, 4294901760
        %1210 = vmatpush.msra.mxu0 %v1209
        %v1211 = vand.u32 %v920, 4294901760
        %1212 = vmatpush.msra.mxu0 %v1211
        %v1213 = vand.u32 %v919, 4294901760
        %1214 = vmatpush.msra.mxu0 %v1213
        %v1215 = vand.u32 %v918, 4294901760
        %1216 = vmatpush.msra.mxu0 %v1215
        %v1217 = vand.u32 %v917, 4294901760
        %1218 = vmatpush.msra.mxu0 %v1217
        %v1219 = vand.u32 %v916, 4294901760
        %1220 = vmatpush.msra.mxu0 %v1219
        %v1221 = vand.u32 %v915, 4294901760
        %1222 = vmatpush.msra.mxu0 %v1221
        %v1223 = vand.u32 %v914, 4294901760
        %1224 = vmatpush.msra.mxu0 %v1223
        %v1225 = vand.u32 %v899, 4294901760
        %v1226 = vsub.f32 %v899, %v1225
        %v1227 = vand.u32 %v1226, 4294901760
        %1228 = vmatmul.f32.gmra.mxu0 %v1227
        %v1229 = vpop.f32.mrf.mxu0
        %v1230 = vadd.f32 %v1176, %v1229
        %v1231 = vand.u32 %v903, 4294901760
        %v1232 = vsub.f32 %v903, %v1231
        %v1233 = vand.u32 %v1232, 4294901760
        %1234 = vmatmul.f32.gmra.mxu0 %v1233
        %v1235 = vpop.f32.mrf.mxu0
        %v1236 = vadd.f32 %v1181, %v1235
        %v1237 = vand.u32 %v907, 4294901760
        %v1238 = vsub.f32 %v907, %v1237
        %v1239 = vand.u32 %v1238, 4294901760
        %1240 = vmatmul.f32.gmra.mxu0 %v1239
        %v1241 = vpop.f32.mrf.mxu0
        %v1242 = vadd.f32 %v1186, %v1241
        %v1243 = vand.u32 %v911, 4294901760
        %v1244 = vsub.f32 %v911, %v1243
        %v1245 = vand.u32 %v1244, 4294901760
        %1246 = vmatmul.f32.gmra.mxu0 %v1245
        %v1247 = vpop.f32.mrf.mxu0
        %v1248 = vadd.f32 %v1191, %v1247
        %1249 = vdwg.mxu0
        %v1250 = vand.u32 %v929, 4294901760
        %v1251 = vsub.f32 %v929, %v1250
        %v1252 = vand.u32 %v1251, 4294901760
        %1253 = vmatpush.msra.mxu0 %v1252
        %v1254 = vand.u32 %v928, 4294901760
        %v1255 = vsub.f32 %v928, %v1254
        %v1256 = vand.u32 %v1255, 4294901760
        %1257 = vmatpush.msra.mxu0 %v1256
        %v1258 = vand.u32 %v927, 4294901760
        %v1259 = vsub.f32 %v927, %v1258
        %v1260 = vand.u32 %v1259, 4294901760
        %1261 = vmatpush.msra.mxu0 %v1260
        %v1262 = vand.u32 %v926, 4294901760
        %v1263 = vsub.f32 %v926, %v1262
        %v1264 = vand.u32 %v1263, 4294901760
        %1265 = vmatpush.msra.mxu0 %v1264
        %v1266 = vand.u32 %v925, 4294901760
        %v1267 = vsub.f32 %v925, %v1266
        %v1268 = vand.u32 %v1267, 4294901760
        %1269 = vmatpush.msra.mxu0 %v1268
        %v1270 = vand.u32 %v924, 4294901760
        %v1271 = vsub.f32 %v924, %v1270
        %v1272 = vand.u32 %v1271, 4294901760
        %1273 = vmatpush.msra.mxu0 %v1272
        %v1274 = vand.u32 %v923, 4294901760
        %v1275 = vsub.f32 %v923, %v1274
        %v1276 = vand.u32 %v1275, 4294901760
        %1277 = vmatpush.msra.mxu0 %v1276
        %v1278 = vand.u32 %v922, 4294901760
        %v1279 = vsub.f32 %v922, %v1278
        %v1280 = vand.u32 %v1279, 4294901760
        %1281 = vmatpush.msra.mxu0 %v1280
        %v1282 = vand.u32 %v921, 4294901760
        %v1283 = vsub.f32 %v921, %v1282
        %v1284 = vand.u32 %v1283, 4294901760
        %1285 = vmatpush.msra.mxu0 %v1284
        %v1286 = vand.u32 %v920, 4294901760
        %v1287 = vsub.f32 %v920, %v1286
        %v1288 = vand.u32 %v1287, 4294901760
        %1289 = vmatpush.msra.mxu0 %v1288
        %v1290 = vand.u32 %v919, 4294901760
        %v1291 = vsub.f32 %v919, %v1290
        %v1292 = vand.u32 %v1291, 4294901760
        %1293 = vmatpush.msra.mxu0 %v1292
        %v1294 = vand.u32 %v918, 4294901760
        %v1295 = vsub.f32 %v918, %v1294
        %v1296 = vand.u32 %v1295, 4294901760
        %1297 = vmatpush.msra.mxu0 %v1296
        %v1298 = vand.u32 %v917, 4294901760
        %v1299 = vsub.f32 %v917, %v1298
        %v1300 = vand.u32 %v1299, 4294901760
        %1301 = vmatpush.msra.mxu0 %v1300
        %v1302 = vand.u32 %v916, 4294901760
        %v1303 = vsub.f32 %v916, %v1302
        %v1304 = vand.u32 %v1303, 4294901760
        %1305 = vmatpush.msra.mxu0 %v1304
        %v1306 = vand.u32 %v915, 4294901760
        %v1307 = vsub.f32 %v915, %v1306
        %v1308 = vand.u32 %v1307, 4294901760
        %1309 = vmatpush.msra.mxu0 %v1308
        %v1310 = vand.u32 %v914, 4294901760
        %v1311 = vsub.f32 %v914, %v1310
        %v1312 = vand.u32 %v1311, 4294901760
        %1313 = vmatpush.msra.mxu0 %v1312
        %v1314 = vand.u32 %v899, 4294901760
        %1315 = vmatmul.f32.gmra.mxu0 %v1314
        %v1316 = vpop.f32.mrf.mxu0
        %v1317 = vadd.f32 %v1230, %v1316
        %v1318 = vand.u32 %v903, 4294901760
        %1319 = vmatmul.f32.gmra.mxu0 %v1318
        %v1320 = vpop.f32.mrf.mxu0
        %v1321 = vadd.f32 %v1236, %v1320
        %v1322 = vand.u32 %v907, 4294901760
        %1323 = vmatmul.f32.gmra.mxu0 %v1322
        %v1324 = vpop.f32.mrf.mxu0
        %v1325 = vadd.f32 %v1242, %v1324
        %v1326 = vand.u32 %v911, 4294901760
        %1327 = vmatmul.f32.gmra.mxu0 %v1326
        %v1328 = vpop.f32.mrf.mxu0
        %v1329 = vadd.f32 %v1248, %v1328
        %1330 = vdwg.mxu0
        %v1331 = vand.u32 %v929, 4294901760
        %1332 = vmatpush.msra.mxu0 %v1331
        %v1333 = vand.u32 %v928, 4294901760
        %1334 = vmatpush.msra.mxu0 %v1333
        %v1335 = vand.u32 %v927, 4294901760
        %1336 = vmatpush.msra.mxu0 %v1335
        %v1337 = vand.u32 %v926, 4294901760
        %1338 = vmatpush.msra.mxu0 %v1337
        %v1339 = vand.u32 %v925, 4294901760
        %1340 = vmatpush.msra.mxu0 %v1339
        %v1341 = vand.u32 %v924, 4294901760
        %1342 = vmatpush.msra.mxu0 %v1341
        %v1343 = vand.u32 %v923, 4294901760
        %1344 = vmatpush.msra.mxu0 %v1343
        %v1345 = vand.u32 %v922, 4294901760
        %1346 = vmatpush.msra.mxu0 %v1345
        %v1347 = vand.u32 %v921, 4294901760
        %1348 = vmatpush.msra.mxu0 %v1347
        %v1349 = vand.u32 %v920, 4294901760
        %1350 = vmatpush.msra.mxu0 %v1349
        %v1351 = vand.u32 %v919, 4294901760
        %1352 = vmatpush.msra.mxu0 %v1351
        %v1353 = vand.u32 %v918, 4294901760
        %1354 = vmatpush.msra.mxu0 %v1353
        %v1355 = vand.u32 %v917, 4294901760
        %1356 = vmatpush.msra.mxu0 %v1355
        %v1357 = vand.u32 %v916, 4294901760
        %1358 = vmatpush.msra.mxu0 %v1357
        %v1359 = vand.u32 %v915, 4294901760
        %1360 = vmatpush.msra.mxu0 %v1359
        %v1361 = vand.u32 %v914, 4294901760
        %1362 = vmatpush.msra.mxu0 %v1361
        %v1363 = vand.u32 %v899, 4294901760
        %1364 = vmatmul.f32.gmra.mxu0 %v1363
        %v1365 = vpop.f32.mrf.mxu0
        %v1366 = vadd.f32 %v1317, %v1365
        %v1367 = vand.u32 %v903, 4294901760
        %1368 = vmatmul.f32.gmra.mxu0 %v1367
        %v1369 = vpop.f32.mrf.mxu0
        %v1370 = vadd.f32 %v1321, %v1369
        %v1371 = vand.u32 %v907, 4294901760
        %1372 = vmatmul.f32.gmra.mxu0 %v1371
        %v1373 = vpop.f32.mrf.mxu0
        %v1374 = vadd.f32 %v1325, %v1373
        %v1375 = vand.u32 %v911, 4294901760
        %1376 = vmatmul.f32.gmra.mxu0 %v1375
        %v1377 = vpop.f32.mrf.mxu0
        %v1378 = vadd.f32 %v1329, %v1377
        %1379 = vdwg.mxu0
        %v1380 = vand.u32 %v945, 4294901760
        %1381 = vmatpush.msra.mxu0 %v1380
        %v1382 = vand.u32 %v944, 4294901760
        %1383 = vmatpush.msra.mxu0 %v1382
        %v1384 = vand.u32 %v943, 4294901760
        %1385 = vmatpush.msra.mxu0 %v1384
        %v1386 = vand.u32 %v942, 4294901760
        %1387 = vmatpush.msra.mxu0 %v1386
        %v1388 = vand.u32 %v941, 4294901760
        %1389 = vmatpush.msra.mxu0 %v1388
        %v1390 = vand.u32 %v940, 4294901760
        %1391 = vmatpush.msra.mxu0 %v1390
        %v1392 = vand.u32 %v939, 4294901760
        %1393 = vmatpush.msra.mxu0 %v1392
        %v1394 = vand.u32 %v938, 4294901760
        %1395 = vmatpush.msra.mxu0 %v1394
        %v1396 = vand.u32 %v937, 4294901760
        %1397 = vmatpush.msra.mxu0 %v1396
        %v1398 = vand.u32 %v936, 4294901760
        %1399 = vmatpush.msra.mxu0 %v1398
        %v1400 = vand.u32 %v935, 4294901760
        %1401 = vmatpush.msra.mxu0 %v1400
        %v1402 = vand.u32 %v934, 4294901760
        %1403 = vmatpush.msra.mxu0 %v1402
        %v1404 = vand.u32 %v933, 4294901760
        %1405 = vmatpush.msra.mxu0 %v1404
        %v1406 = vand.u32 %v932, 4294901760
        %1407 = vmatpush.msra.mxu0 %v1406
        %v1408 = vand.u32 %v931, 4294901760
        %1409 = vmatpush.msra.mxu0 %v1408
        %v1410 = vand.u32 %v930, 4294901760
        %1411 = vmatpush.msra.mxu0 %v1410
        %v1412 = vand.u32 %v901, 4294901760
        %v1413 = vsub.f32 %v901, %v1412
        %v1414 = vand.u32 %v1413, 4294901760
        %v1415 = vsub.f32 %v1413, %v1414
        %v1416 = vand.u32 %v1415, 4294901760
        %1417 = vmatmul.f32.gmra.mxu0 %v1416
        %v1418 = vpop.f32.mrf.mxu0
        %v1419 = vadd.f32 %v1366, %v1418
        %v1420 = vand.u32 %v905, 4294901760
        %v1421 = vsub.f32 %v905, %v1420
        %v1422 = vand.u32 %v1421, 4294901760
        %v1423 = vsub.f32 %v1421, %v1422
        %v1424 = vand.u32 %v1423, 4294901760
        %1425 = vmatmul.f32.gmra.mxu0 %v1424
        %v1426 = vpop.f32.mrf.mxu0
        %v1427 = vadd.f32 %v1370, %v1426
        %v1428 = vand.u32 %v909, 4294901760
        %v1429 = vsub.f32 %v909, %v1428
        %v1430 = vand.u32 %v1429, 4294901760
        %v1431 = vsub.f32 %v1429, %v1430
        %v1432 = vand.u32 %v1431, 4294901760
        %1433 = vmatmul.f32.gmra.mxu0 %v1432
        %v1434 = vpop.f32.mrf.mxu0
        %v1435 = vadd.f32 %v1374, %v1434
        %v1436 = vand.u32 %v913, 4294901760
        %v1437 = vsub.f32 %v913, %v1436
        %v1438 = vand.u32 %v1437, 4294901760
        %v1439 = vsub.f32 %v1437, %v1438
        %v1440 = vand.u32 %v1439, 4294901760
        %1441 = vmatmul.f32.gmra.mxu0 %v1440
        %v1442 = vpop.f32.mrf.mxu0
        %v1443 = vadd.f32 %v1378, %v1442
        %1444 = vdwg.mxu0
        %v1445 = vand.u32 %v945, 4294901760
        %v1446 = vsub.f32 %v945, %v1445
        %v1447 = vand.u32 %v1446, 4294901760
        %v1448 = vsub.f32 %v1446, %v1447
        %v1449 = vand.u32 %v1448, 4294901760
        %1450 = vmatpush.msra.mxu0 %v1449
        %v1451 = vand.u32 %v944, 4294901760
        %v1452 = vsub.f32 %v944, %v1451
        %v1453 = vand.u32 %v1452, 4294901760
        %v1454 = vsub.f32 %v1452, %v1453
        %v1455 = vand.u32 %v1454, 4294901760
        %1456 = vmatpush.msra.mxu0 %v1455
        %v1457 = vand.u32 %v943, 4294901760
        %v1458 = vsub.f32 %v943, %v1457
        %v1459 = vand.u32 %v1458, 4294901760
        %v1460 = vsub.f32 %v1458, %v1459
        %v1461 = vand.u32 %v1460, 4294901760
        %1462 = vmatpush.msra.mxu0 %v1461
        %v1463 = vand.u32 %v942, 4294901760
        %v1464 = vsub.f32 %v942, %v1463
        %v1465 = vand.u32 %v1464, 4294901760
        %v1466 = vsub.f32 %v1464, %v1465
        %v1467 = vand.u32 %v1466, 4294901760
        %1468 = vmatpush.msra.mxu0 %v1467
        %v1469 = vand.u32 %v941, 4294901760
        %v1470 = vsub.f32 %v941, %v1469
        %v1471 = vand.u32 %v1470, 4294901760
        %v1472 = vsub.f32 %v1470, %v1471
        %v1473 = vand.u32 %v1472, 4294901760
        %1474 = vmatpush.msra.mxu0 %v1473
        %v1475 = vand.u32 %v940, 4294901760
        %v1476 = vsub.f32 %v940, %v1475
        %v1477 = vand.u32 %v1476, 4294901760
        %v1478 = vsub.f32 %v1476, %v1477
        %v1479 = vand.u32 %v1478, 4294901760
        %1480 = vmatpush.msra.mxu0 %v1479
        %v1481 = vand.u32 %v939, 4294901760
        %v1482 = vsub.f32 %v939, %v1481
        %v1483 = vand.u32 %v1482, 4294901760
        %v1484 = vsub.f32 %v1482, %v1483
        %v1485 = vand.u32 %v1484, 4294901760
        %1486 = vmatpush.msra.mxu0 %v1485
        %v1487 = vand.u32 %v938, 4294901760
        %v1488 = vsub.f32 %v938, %v1487
        %v1489 = vand.u32 %v1488, 4294901760
        %v1490 = vsub.f32 %v1488, %v1489
        %v1491 = vand.u32 %v1490, 4294901760
        %1492 = vmatpush.msra.mxu0 %v1491
        %v1493 = vand.u32 %v937, 4294901760
        %v1494 = vsub.f32 %v937, %v1493
        %v1495 = vand.u32 %v1494, 4294901760
        %v1496 = vsub.f32 %v1494, %v1495
        %v1497 = vand.u32 %v1496, 4294901760
        %1498 = vmatpush.msra.mxu0 %v1497
        %v1499 = vand.u32 %v936, 4294901760
        %v1500 = vsub.f32 %v936, %v1499
        %v1501 = vand.u32 %v1500, 4294901760
        %v1502 = vsub.f32 %v1500, %v1501
        %v1503 = vand.u32 %v1502, 4294901760
        %1504 = vmatpush.msra.mxu0 %v1503
        %v1505 = vand.u32 %v935, 4294901760
        %v1506 = vsub.f32 %v935, %v1505
        %v1507 = vand.u32 %v1506, 4294901760
        %v1508 = vsub.f32 %v1506, %v1507
        %v1509 = vand.u32 %v1508, 4294901760
        %1510 = vmatpush.msra.mxu0 %v1509
        %v1511 = vand.u32 %v934, 4294901760
        %v1512 = vsub.f32 %v934, %v1511
        %v1513 = vand.u32 %v1512, 4294901760
        %v1514 = vsub.f32 %v1512, %v1513
        %v1515 = vand.u32 %v1514, 4294901760
        %1516 = vmatpush.msra.mxu0 %v1515
        %v1517 = vand.u32 %v933, 4294901760
        %v1518 = vsub.f32 %v933, %v1517
        %v1519 = vand.u32 %v1518, 4294901760
        %v1520 = vsub.f32 %v1518, %v1519
        %v1521 = vand.u32 %v1520, 4294901760
        %1522 = vmatpush.msra.mxu0 %v1521
        %v1523 = vand.u32 %v932, 4294901760
        %v1524 = vsub.f32 %v932, %v1523
        %v1525 = vand.u32 %v1524, 4294901760
        %v1526 = vsub.f32 %v1524, %v1525
        %v1527 = vand.u32 %v1526, 4294901760
        %1528 = vmatpush.msra.mxu0 %v1527
        %v1529 = vand.u32 %v931, 4294901760
        %v1530 = vsub.f32 %v931, %v1529
        %v1531 = vand.u32 %v1530, 4294901760
        %v1532 = vsub.f32 %v1530, %v1531
        %v1533 = vand.u32 %v1532, 4294901760
        %1534 = vmatpush.msra.mxu0 %v1533
        %v1535 = vand.u32 %v930, 4294901760
        %v1536 = vsub.f32 %v930, %v1535
        %v1537 = vand.u32 %v1536, 4294901760
        %v1538 = vsub.f32 %v1536, %v1537
        %v1539 = vand.u32 %v1538, 4294901760
        %1540 = vmatpush.msra.mxu0 %v1539
        %v1541 = vand.u32 %v901, 4294901760
        %1542 = vmatmul.f32.gmra.mxu0 %v1541
        %v1543 = vpop.f32.mrf.mxu0
        %v1544 = vadd.f32 %v1419, %v1543
        %v1545 = vand.u32 %v905, 4294901760
        %1546 = vmatmul.f32.gmra.mxu0 %v1545
        %v1547 = vpop.f32.mrf.mxu0
        %v1548 = vadd.f32 %v1427, %v1547
        %v1549 = vand.u32 %v909, 4294901760
        %1550 = vmatmul.f32.gmra.mxu0 %v1549
        %v1551 = vpop.f32.mrf.mxu0
        %v1552 = vadd.f32 %v1435, %v1551
        %v1553 = vand.u32 %v913, 4294901760
        %1554 = vmatmul.f32.gmra.mxu0 %v1553
        %v1555 = vpop.f32.mrf.mxu0
        %v1556 = vadd.f32 %v1443, %v1555
        %1557 = vdwg.mxu0
        %v1558 = vand.u32 %v945, 4294901760
        %v1559 = vsub.f32 %v945, %v1558
        %1560 = vmatpush.msra.mxu0 %v1559
        %v1561 = vand.u32 %v944, 4294901760
        %v1562 = vsub.f32 %v944, %v1561
        %1563 = vmatpush.msra.mxu0 %v1562
        %v1564 = vand.u32 %v943, 4294901760
        %v1565 = vsub.f32 %v943, %v1564
        %1566 = vmatpush.msra.mxu0 %v1565
        %v1567 = vand.u32 %v942, 4294901760
        %v1568 = vsub.f32 %v942, %v1567
        %1569 = vmatpush.msra.mxu0 %v1568
        %v1570 = vand.u32 %v941, 4294901760
        %v1571 = vsub.f32 %v941, %v1570
        %1572 = vmatpush.msra.mxu0 %v1571
        %v1573 = vand.u32 %v940, 4294901760
        %v1574 = vsub.f32 %v940, %v1573
        %1575 = vmatpush.msra.mxu0 %v1574
        %v1576 = vand.u32 %v939, 4294901760
        %v1577 = vsub.f32 %v939, %v1576
        %1578 = vmatpush.msra.mxu0 %v1577
        %v1579 = vand.u32 %v938, 4294901760
        %v1580 = vsub.f32 %v938, %v1579
        %1581 = vmatpush.msra.mxu0 %v1580
        %v1582 = vand.u32 %v937, 4294901760
        %v1583 = vsub.f32 %v937, %v1582
        %1584 = vmatpush.msra.mxu0 %v1583
        %v1585 = vand.u32 %v936, 4294901760
        %v1586 = vsub.f32 %v936, %v1585
        %1587 = vmatpush.msra.mxu0 %v1586
        %v1588 = vand.u32 %v935, 4294901760
        %v1589 = vsub.f32 %v935, %v1588
        %1590 = vmatpush.msra.mxu0 %v1589
        %v1591 = vand.u32 %v934, 4294901760
        %v1592 = vsub.f32 %v934, %v1591
        %1593 = vmatpush.msra.mxu0 %v1592
        %v1594 = vand.u32 %v933, 4294901760
        %v1595 = vsub.f32 %v933, %v1594
        %1596 = vmatpush.msra.mxu0 %v1595
        %v1597 = vand.u32 %v932, 4294901760
        %v1598 = vsub.f32 %v932, %v1597
        %1599 = vmatpush.msra.mxu0 %v1598
        %v1600 = vand.u32 %v931, 4294901760
        %v1601 = vsub.f32 %v931, %v1600
        %1602 = vmatpush.msra.mxu0 %v1601
        %v1603 = vand.u32 %v930, 4294901760
        %v1604 = vsub.f32 %v930, %v1603
        %1605 = vmatpush.msra.mxu0 %v1604
        %v1606 = vand.u32 %v901, 4294901760
        %v1607 = vsub.f32 %v901, %v1606
        %1608 = vmatmul.f32.gmra.mxu0 %v1607
        %v1609 = vpop.f32.mrf.mxu0
        %v1610 = vadd.f32 %v1544, %v1609
        %v1611 = vand.u32 %v905, 4294901760
        %v1612 = vsub.f32 %v905, %v1611
        %1613 = vmatmul.f32.gmra.mxu0 %v1612
        %v1614 = vpop.f32.mrf.mxu0
        %v1615 = vadd.f32 %v1548, %v1614
        %v1616 = vand.u32 %v909, 4294901760
        %v1617 = vsub.f32 %v909, %v1616
        %1618 = vmatmul.f32.gmra.mxu0 %v1617
        %v1619 = vpop.f32.mrf.mxu0
        %v1620 = vadd.f32 %v1552, %v1619
        %v1621 = vand.u32 %v913, 4294901760
        %v1622 = vsub.f32 %v913, %v1621
        %1623 = vmatmul.f32.gmra.mxu0 %v1622
        %v1624 = vpop.f32.mrf.mxu0
        %v1625 = vadd.f32 %v1556, %v1624
        %1626 = vdwg.mxu0
        %v1627 = vand.u32 %v945, 4294901760
        %1628 = vmatpush.msra.mxu0 %v1627
        %v1629 = vand.u32 %v944, 4294901760
        %1630 = vmatpush.msra.mxu0 %v1629
        %v1631 = vand.u32 %v943, 4294901760
        %1632 = vmatpush.msra.mxu0 %v1631
        %v1633 = vand.u32 %v942, 4294901760
        %1634 = vmatpush.msra.mxu0 %v1633
        %v1635 = vand.u32 %v941, 4294901760
        %1636 = vmatpush.msra.mxu0 %v1635
        %v1637 = vand.u32 %v940, 4294901760
        %1638 = vmatpush.msra.mxu0 %v1637
        %v1639 = vand.u32 %v939, 4294901760
        %1640 = vmatpush.msra.mxu0 %v1639
        %v1641 = vand.u32 %v938, 4294901760
        %1642 = vmatpush.msra.mxu0 %v1641
        %v1643 = vand.u32 %v937, 4294901760
        %1644 = vmatpush.msra.mxu0 %v1643
        %v1645 = vand.u32 %v936, 4294901760
        %1646 = vmatpush.msra.mxu0 %v1645
        %v1647 = vand.u32 %v935, 4294901760
        %1648 = vmatpush.msra.mxu0 %v1647
        %v1649 = vand.u32 %v934, 4294901760
        %1650 = vmatpush.msra.mxu0 %v1649
        %v1651 = vand.u32 %v933, 4294901760
        %1652 = vmatpush.msra.mxu0 %v1651
        %v1653 = vand.u32 %v932, 4294901760
        %1654 = vmatpush.msra.mxu0 %v1653
        %v1655 = vand.u32 %v931, 4294901760
        %1656 = vmatpush.msra.mxu0 %v1655
        %v1657 = vand.u32 %v930, 4294901760
        %1658 = vmatpush.msra.mxu0 %v1657
        %v1659 = vand.u32 %v901, 4294901760
        %v1660 = vsub.f32 %v901, %v1659
        %v1661 = vand.u32 %v1660, 4294901760
        %1662 = vmatmul.f32.gmra.mxu0 %v1661
        %v1663 = vpop.f32.mrf.mxu0
        %v1664 = vadd.f32 %v1610, %v1663
        %v1665 = vand.u32 %v905, 4294901760
        %v1666 = vsub.f32 %v905, %v1665
        %v1667 = vand.u32 %v1666, 4294901760
        %1668 = vmatmul.f32.gmra.mxu0 %v1667
        %v1669 = vpop.f32.mrf.mxu0
        %v1670 = vadd.f32 %v1615, %v1669
        %v1671 = vand.u32 %v909, 4294901760
        %v1672 = vsub.f32 %v909, %v1671
        %v1673 = vand.u32 %v1672, 4294901760
        %1674 = vmatmul.f32.gmra.mxu0 %v1673
        %v1675 = vpop.f32.mrf.mxu0
        %v1676 = vadd.f32 %v1620, %v1675
        %v1677 = vand.u32 %v913, 4294901760
        %v1678 = vsub.f32 %v913, %v1677
        %v1679 = vand.u32 %v1678, 4294901760
        %1680 = vmatmul.f32.gmra.mxu0 %v1679
        %v1681 = vpop.f32.mrf.mxu0
        %v1682 = vadd.f32 %v1625, %v1681
        %1683 = vdwg.mxu0
        %v1684 = vand.u32 %v945, 4294901760
        %v1685 = vsub.f32 %v945, %v1684
        %v1686 = vand.u32 %v1685, 4294901760
        %1687 = vmatpush.msra.mxu0 %v1686
        %v1688 = vand.u32 %v944, 4294901760
        %v1689 = vsub.f32 %v944, %v1688
        %v1690 = vand.u32 %v1689, 4294901760
        %1691 = vmatpush.msra.mxu0 %v1690
        %v1692 = vand.u32 %v943, 4294901760
        %v1693 = vsub.f32 %v943, %v1692
        %v1694 = vand.u32 %v1693, 4294901760
        %1695 = vmatpush.msra.mxu0 %v1694
        %v1696 = vand.u32 %v942, 4294901760
        %v1697 = vsub.f32 %v942, %v1696
        %v1698 = vand.u32 %v1697, 4294901760
        %1699 = vmatpush.msra.mxu0 %v1698
        %v1700 = vand.u32 %v941, 4294901760
        %v1701 = vsub.f32 %v941, %v1700
        %v1702 = vand.u32 %v1701, 4294901760
        %1703 = vmatpush.msra.mxu0 %v1702
        %v1704 = vand.u32 %v940, 4294901760
        %v1705 = vsub.f32 %v940, %v1704
        %v1706 = vand.u32 %v1705, 4294901760
        %1707 = vmatpush.msra.mxu0 %v1706
        %v1708 = vand.u32 %v939, 4294901760
        %v1709 = vsub.f32 %v939, %v1708
        %v1710 = vand.u32 %v1709, 4294901760
        %1711 = vmatpush.msra.mxu0 %v1710
        %v1712 = vand.u32 %v938, 4294901760
        %v1713 = vsub.f32 %v938, %v1712
        %v1714 = vand.u32 %v1713, 4294901760
        %1715 = vmatpush.msra.mxu0 %v1714
        %v1716 = vand.u32 %v937, 4294901760
        %v1717 = vsub.f32 %v937, %v1716
        %v1718 = vand.u32 %v1717, 4294901760
        %1719 = vmatpush.msra.mxu0 %v1718
        %v1720 = vand.u32 %v936, 4294901760
        %v1721 = vsub.f32 %v936, %v1720
        %v1722 = vand.u32 %v1721, 4294901760
        %1723 = vmatpush.msra.mxu0 %v1722
        %v1724 = vand.u32 %v935, 4294901760
        %v1725 = vsub.f32 %v935, %v1724
        %v1726 = vand.u32 %v1725, 4294901760
        %1727 = vmatpush.msra.mxu0 %v1726
        %v1728 = vand.u32 %v934, 4294901760
        %v1729 = vsub.f32 %v934, %v1728
        %v1730 = vand.u32 %v1729, 4294901760
        %1731 = vmatpush.msra.mxu0 %v1730
        %v1732 = vand.u32 %v933, 4294901760
        %v1733 = vsub.f32 %v933, %v1732
        %v1734 = vand.u32 %v1733, 4294901760
        %1735 = vmatpush.msra.mxu0 %v1734
        %v1736 = vand.u32 %v932, 4294901760
        %v1737 = vsub.f32 %v932, %v1736
        %v1738 = vand.u32 %v1737, 4294901760
        %1739 = vmatpush.msra.mxu0 %v1738
        %v1740 = vand.u32 %v931, 4294901760
        %v1741 = vsub.f32 %v931, %v1740
        %v1742 = vand.u32 %v1741, 4294901760
        %1743 = vmatpush.msra.mxu0 %v1742
        %v1744 = vand.u32 %v930, 4294901760
        %v1745 = vsub.f32 %v930, %v1744
        %v1746 = vand.u32 %v1745, 4294901760
        %1747 = vmatpush.msra.mxu0 %v1746
        %v1748 = vand.u32 %v901, 4294901760
        %1749 = vmatmul.f32.gmra.mxu0 %v1748
        %v1750 = vpop.f32.mrf.mxu0
        %v1751 = vadd.f32 %v1664, %v1750
        %v1752 = vand.u32 %v905, 4294901760
        %1753 = vmatmul.f32.gmra.mxu0 %v1752
        %v1754 = vpop.f32.mrf.mxu0
        %v1755 = vadd.f32 %v1670, %v1754
        %v1756 = vand.u32 %v909, 4294901760
        %1757 = vmatmul.f32.gmra.mxu0 %v1756
        %v1758 = vpop.f32.mrf.mxu0
        %v1759 = vadd.f32 %v1676, %v1758
        %v1760 = vand.u32 %v913, 4294901760
        %1761 = vmatmul.f32.gmra.mxu0 %v1760
        %v1762 = vpop.f32.mrf.mxu0
        %v1763 = vadd.f32 %v1682, %v1762
        %1764 = vdwg.mxu0
        %v1765 = vand.u32 %v945, 4294901760
        %1766 = vmatpush.msra.mxu0 %v1765
        %v1767 = vand.u32 %v944, 4294901760
        %1768 = vmatpush.msra.mxu0 %v1767
        %v1769 = vand.u32 %v943, 4294901760
        %1770 = vmatpush.msra.mxu0 %v1769
        %v1771 = vand.u32 %v942, 4294901760
        %1772 = vmatpush.msra.mxu0 %v1771
        %v1773 = vand.u32 %v941, 4294901760
        %1774 = vmatpush.msra.mxu0 %v1773
        %v1775 = vand.u32 %v940, 4294901760
        %1776 = vmatpush.msra.mxu0 %v1775
        %v1777 = vand.u32 %v939, 4294901760
        %1778 = vmatpush.msra.mxu0 %v1777
        %v1779 = vand.u32 %v938, 4294901760
        %1780 = vmatpush.msra.mxu0 %v1779
        %v1781 = vand.u32 %v937, 4294901760
        %1782 = vmatpush.msra.mxu0 %v1781
        %v1783 = vand.u32 %v936, 4294901760
        %1784 = vmatpush.msra.mxu0 %v1783
        %v1785 = vand.u32 %v935, 4294901760
        %1786 = vmatpush.msra.mxu0 %v1785
        %v1787 = vand.u32 %v934, 4294901760
        %1788 = vmatpush.msra.mxu0 %v1787
        %v1789 = vand.u32 %v933, 4294901760
        %1790 = vmatpush.msra.mxu0 %v1789
        %v1791 = vand.u32 %v932, 4294901760
        %1792 = vmatpush.msra.mxu0 %v1791
        %v1793 = vand.u32 %v931, 4294901760
        %1794 = vmatpush.msra.mxu0 %v1793
        %v1795 = vand.u32 %v930, 4294901760
        %1796 = vmatpush.msra.mxu0 %v1795
        %v1797 = vand.u32 %v901, 4294901760
        %1798 = vmatmul.f32.gmra.mxu0 %v1797
        %v1799 = vpop.f32.mrf.mxu0
        %v1800 = vadd.f32 %v1751, %v1799
        %v1801 = vand.u32 %v905, 4294901760
        %1802 = vmatmul.f32.gmra.mxu0 %v1801
        %v1803 = vpop.f32.mrf.mxu0
        %v1804 = vadd.f32 %v1755, %v1803
        %v1805 = vand.u32 %v909, 4294901760
        %1806 = vmatmul.f32.gmra.mxu0 %v1805
        %v1807 = vpop.f32.mrf.mxu0
        %v1808 = vadd.f32 %v1759, %v1807
        %v1809 = vand.u32 %v913, 4294901760
        %1810 = vmatmul.f32.gmra.mxu0 %v1809
        %v1811 = vpop.f32.mrf.mxu0
        %v1812 = vadd.f32 %v1763, %v1811
        %1813 = vdwg.mxu0
        %v1814 = vrcp.pop %v1800
        %v1815 = vmul.f32 %v1800, %v1814
        %v1816 = vsub.f32 1.0, %v1815
        %v1817 = vmul.f32 %v1814, %v1816
        %v1818 = vadd.f32 %v1814, %v1817
        %vm1819 = vweird.f32 %v1800
        %vm1820 = vweird.f32 %v1814
        %vm1821 = vmor %vm1819, %vm1820
        %v1822 = vsel %vm1821, %v1814, %v1818
        %v1823 = vand.u32 2147483647, %v1800
        %vm1824 = vcmp.eq.f32.partialorder %v1823, 8.507059e+37
        %v1825 = vand.u32 %v1800, 2147483648
        %v1826 = vor.u32 1.1754944e-38, %v1825
        %v1827 = vsel %vm1824, %v1826, %v1822
        %v1828 = vrcp.pop %v1804
        %v1829 = vmul.f32 %v1804, %v1828
        %v1830 = vsub.f32 1.0, %v1829
        %v1831 = vmul.f32 %v1828, %v1830
        %v1832 = vadd.f32 %v1828, %v1831
        %vm1833 = vweird.f32 %v1804
        %vm1834 = vweird.f32 %v1828
        %vm1835 = vmor %vm1833, %vm1834
        %v1836 = vsel %vm1835, %v1828, %v1832
        %v1837 = vand.u32 2147483647, %v1804
        %vm1838 = vcmp.eq.f32.partialorder %v1837, 8.507059e+37
        %v1839 = vand.u32 %v1804, 2147483648
        %v1840 = vor.u32 1.1754944e-38, %v1839
        %v1841 = vsel %vm1838, %v1840, %v1836
        %v1842 = vrcp.pop %v1808
        %v1843 = vmul.f32 %v1808, %v1842
        %v1844 = vsub.f32 1.0, %v1843
        %v1845 = vmul.f32 %v1842, %v1844
        %v1846 = vadd.f32 %v1842, %v1845
        %vm1847 = vweird.f32 %v1808
        %vm1848 = vweird.f32 %v1842
        %vm1849 = vmor %vm1847, %vm1848
        %v1850 = vsel %vm1849, %v1842, %v1846
        %v1851 = vand.u32 2147483647, %v1808
        %vm1852 = vcmp.eq.f32.partialorder %v1851, 8.507059e+37
        %v1853 = vand.u32 %v1808, 2147483648
        %v1854 = vor.u32 1.1754944e-38, %v1853
        %v1855 = vsel %vm1852, %v1854, %v1850
        %v1856 = vrcp.pop %v1812
        %v1857 = vmul.f32 %v1812, %v1856
        %v1858 = vsub.f32 1.0, %v1857
        %v1859 = vmul.f32 %v1856, %v1858
        %v1860 = vadd.f32 %v1856, %v1859
        %vm1861 = vweird.f32 %v1812
        %vm1862 = vweird.f32 %v1856
        %vm1863 = vmor %vm1861, %vm1862
        %v1864 = vsel %vm1863, %v1856, %v1860
        %v1865 = vand.u32 2147483647, %v1812
        %vm1866 = vcmp.eq.f32.partialorder %v1865, 8.507059e+37
        %v1867 = vand.u32 %v1812, 2147483648
        %v1868 = vor.u32 1.1754944e-38, %v1867
        %v1869 = vsel %vm1866, %v1868, %v1864
        %v1871 = vsel %vm367, %v1827, 0
        %v1874 = vsel %vm367, %v1841, 0
        %v1877 = vsel %vm367, %v1855, 0
        %v1880 = vsel %vm367, %v1869, 0
        %1882 = vmatpush.msra.mxu0 0.0
        %1883 = vmatpush.msra.mxu0 0.0
        %1884 = vmatpush.msra.mxu0 0.0
        %1885 = vmatpush.msra.mxu0 0.0
        %1886 = vmatpush.msra.mxu0 0.0
        %1887 = vmatpush.msra.mxu0 0.0
        %1888 = vmatpush.msra.mxu0 0.0
        %1889 = vmatpush.msra.mxu0 0.0
        %1890 = vmatpush.msra.mxu0 0.0
        %1891 = vmatpush.msra.mxu0 0.0
        %1892 = vmatpush.msra.mxu0 0.0
        %1893 = vmatpush.msra.mxu0 0.0
        %1894 = vmatpush.msra.mxu0 0.0
        %1895 = vmatpush.msra.mxu0 0.0
        %v1896 = vand.u32 %v365, 4294901760
        %1897 = vmatpush.msra.mxu0 %v1896
        %v1898 = vand.u32 %v363, 4294901760
        %1899 = vmatpush.msra.mxu0 %v1898
        %v1900 = vand.u32 %v1871, 4294901760
        %v1901 = vsub.f32 %v1871, %v1900
        %v1902 = vand.u32 %v1901, 4294901760
        %v1903 = vsub.f32 %v1901, %v1902
        %v1904 = vand.u32 %v1903, 4294901760
        %1905 = vmatmul.f32.gmra.mxu0 %v1904
        %v1906 = vpop.f32.mrf.mxu0
        %v1907 = vadd.f32 0.0, %v1906
        %v1908 = vand.u32 %v1874, 4294901760
        %v1909 = vsub.f32 %v1874, %v1908
        %v1910 = vand.u32 %v1909, 4294901760
        %v1911 = vsub.f32 %v1909, %v1910
        %v1912 = vand.u32 %v1911, 4294901760
        %1913 = vmatmul.f32.gmra.mxu0 %v1912
        %v1914 = vpop.f32.mrf.mxu0
        %v1915 = vadd.f32 0.0, %v1914
        %v1916 = vand.u32 %v1877, 4294901760
        %v1917 = vsub.f32 %v1877, %v1916
        %v1918 = vand.u32 %v1917, 4294901760
        %v1919 = vsub.f32 %v1917, %v1918
        %v1920 = vand.u32 %v1919, 4294901760
        %1921 = vmatmul.f32.gmra.mxu0 %v1920
        %v1922 = vpop.f32.mrf.mxu0
        %v1923 = vadd.f32 0.0, %v1922
        %v1924 = vand.u32 %v1880, 4294901760
        %v1925 = vsub.f32 %v1880, %v1924
        %v1926 = vand.u32 %v1925, 4294901760
        %v1927 = vsub.f32 %v1925, %v1926
        %v1928 = vand.u32 %v1927, 4294901760
        %1929 = vmatmul.f32.gmra.mxu0 %v1928
        %v1930 = vpop.f32.mrf.mxu0
        %v1931 = vadd.f32 0.0, %v1930
        %1932 = vdwg.mxu0
        %1933 = vmatpush.msra.mxu0 0.0
        %1934 = vmatpush.msra.mxu0 0.0
        %1935 = vmatpush.msra.mxu0 0.0
        %1936 = vmatpush.msra.mxu0 0.0
        %1937 = vmatpush.msra.mxu0 0.0
        %1938 = vmatpush.msra.mxu0 0.0
        %1939 = vmatpush.msra.mxu0 0.0
        %1940 = vmatpush.msra.mxu0 0.0
        %1941 = vmatpush.msra.mxu0 0.0
        %1942 = vmatpush.msra.mxu0 0.0
        %1943 = vmatpush.msra.mxu0 0.0
        %1944 = vmatpush.msra.mxu0 0.0
        %1945 = vmatpush.msra.mxu0 0.0
        %1946 = vmatpush.msra.mxu0 0.0
        %v1947 = vand.u32 %v365, 4294901760
        %v1948 = vsub.f32 %v365, %v1947
        %v1949 = vand.u32 %v1948, 4294901760
        %v1950 = vsub.f32 %v1948, %v1949
        %v1951 = vand.u32 %v1950, 4294901760
        %1952 = vmatpush.msra.mxu0 %v1951
        %v1953 = vand.u32 %v363, 4294901760
        %v1954 = vsub.f32 %v363, %v1953
        %v1955 = vand.u32 %v1954, 4294901760
        %v1956 = vsub.f32 %v1954, %v1955
        %v1957 = vand.u32 %v1956, 4294901760
        %1958 = vmatpush.msra.mxu0 %v1957
        %v1959 = vand.u32 %v1871, 4294901760
        %1960 = vmatmul.f32.gmra.mxu0 %v1959
        %v1961 = vpop.f32.mrf.mxu0
        %v1962 = vadd.f32 %v1907, %v1961
        %v1963 = vand.u32 %v1874, 4294901760
        %1964 = vmatmul.f32.gmra.mxu0 %v1963
        %v1965 = vpop.f32.mrf.mxu0
        %v1966 = vadd.f32 %v1915, %v1965
        %v1967 = vand.u32 %v1877, 4294901760
        %1968 = vmatmul.f32.gmra.mxu0 %v1967
        %v1969 = vpop.f32.mrf.mxu0
        %v1970 = vadd.f32 %v1923, %v1969
        %v1971 = vand.u32 %v1880, 4294901760
        %1972 = vmatmul.f32.gmra.mxu0 %v1971
        %v1973 = vpop.f32.mrf.mxu0
        %v1974 = vadd.f32 %v1931, %v1973
        %1975 = vdwg.mxu0
        %1976 = vmatpush.msra.mxu0 0.0
        %1977 = vmatpush.msra.mxu0 0.0
        %1978 = vmatpush.msra.mxu0 0.0
        %1979 = vmatpush.msra.mxu0 0.0
        %1980 = vmatpush.msra.mxu0 0.0
        %1981 = vmatpush.msra.mxu0 0.0
        %1982 = vmatpush.msra.mxu0 0.0
        %1983 = vmatpush.msra.mxu0 0.0
        %1984 = vmatpush.msra.mxu0 0.0
        %1985 = vmatpush.msra.mxu0 0.0
        %1986 = vmatpush.msra.mxu0 0.0
        %1987 = vmatpush.msra.mxu0 0.0
        %1988 = vmatpush.msra.mxu0 0.0
        %1989 = vmatpush.msra.mxu0 0.0
        %v1990 = vand.u32 %v365, 4294901760
        %v1991 = vsub.f32 %v365, %v1990
        %1992 = vmatpush.msra.mxu0 %v1991
        %v1993 = vand.u32 %v363, 4294901760
        %v1994 = vsub.f32 %v363, %v1993
        %1995 = vmatpush.msra.mxu0 %v1994
        %v1996 = vand.u32 %v1871, 4294901760
        %v1997 = vsub.f32 %v1871, %v1996
        %1998 = vmatmul.f32.gmra.mxu0 %v1997
        %v1999 = vpop.f32.mrf.mxu0
        %v2000 = vadd.f32 %v1962, %v1999
        %v2001 = vand.u32 %v1874, 4294901760
        %v2002 = vsub.f32 %v1874, %v2001
        %2003 = vmatmul.f32.gmra.mxu0 %v2002
        %v2004 = vpop.f32.mrf.mxu0
        %v2005 = vadd.f32 %v1966, %v2004
        %v2006 = vand.u32 %v1877, 4294901760
        %v2007 = vsub.f32 %v1877, %v2006
        %2008 = vmatmul.f32.gmra.mxu0 %v2007
        %v2009 = vpop.f32.mrf.mxu0
        %v2010 = vadd.f32 %v1970, %v2009
        %v2011 = vand.u32 %v1880, 4294901760
        %v2012 = vsub.f32 %v1880, %v2011
        %2013 = vmatmul.f32.gmra.mxu0 %v2012
        %v2014 = vpop.f32.mrf.mxu0
        %v2015 = vadd.f32 %v1974, %v2014
        %2016 = vdwg.mxu0
        %2017 = vmatpush.msra.mxu0 0.0
        %2018 = vmatpush.msra.mxu0 0.0
        %2019 = vmatpush.msra.mxu0 0.0
        %2020 = vmatpush.msra.mxu0 0.0
        %2021 = vmatpush.msra.mxu0 0.0
        %2022 = vmatpush.msra.mxu0 0.0
        %2023 = vmatpush.msra.mxu0 0.0
        %2024 = vmatpush.msra.mxu0 0.0
        %2025 = vmatpush.msra.mxu0 0.0
        %2026 = vmatpush.msra.mxu0 0.0
        %2027 = vmatpush.msra.mxu0 0.0
        %2028 = vmatpush.msra.mxu0 0.0
        %2029 = vmatpush.msra.mxu0 0.0
        %2030 = vmatpush.msra.mxu0 0.0
        %v2031 = vand.u32 %v365, 4294901760
        %2032 = vmatpush.msra.mxu0 %v2031
        %v2033 = vand.u32 %v363, 4294901760
        %2034 = vmatpush.msra.mxu0 %v2033
        %v2035 = vand.u32 %v1871, 4294901760
        %v2036 = vsub.f32 %v1871, %v2035
        %v2037 = vand.u32 %v2036, 4294901760
        %2038 = vmatmul.f32.gmra.mxu0 %v2037
        %v2039 = vpop.f32.mrf.mxu0
        %v2040 = vadd.f32 %v2000, %v2039
        %v2041 = vand.u32 %v1874, 4294901760
        %v2042 = vsub.f32 %v1874, %v2041
        %v2043 = vand.u32 %v2042, 4294901760
        %2044 = vmatmul.f32.gmra.mxu0 %v2043
        %v2045 = vpop.f32.mrf.mxu0
        %v2046 = vadd.f32 %v2005, %v2045
        %v2047 = vand.u32 %v1877, 4294901760
        %v2048 = vsub.f32 %v1877, %v2047
        %v2049 = vand.u32 %v2048, 4294901760
        %2050 = vmatmul.f32.gmra.mxu0 %v2049
        %v2051 = vpop.f32.mrf.mxu0
        %v2052 = vadd.f32 %v2010, %v2051
        %v2053 = vand.u32 %v1880, 4294901760
        %v2054 = vsub.f32 %v1880, %v2053
        %v2055 = vand.u32 %v2054, 4294901760
        %2056 = vmatmul.f32.gmra.mxu0 %v2055
        %v2057 = vpop.f32.mrf.mxu0
        %v2058 = vadd.f32 %v2015, %v2057
        %2059 = vdwg.mxu0
        %2060 = vmatpush.msra.mxu0 0.0
        %2061 = vmatpush.msra.mxu0 0.0
        %2062 = vmatpush.msra.mxu0 0.0
        %2063 = vmatpush.msra.mxu0 0.0
        %2064 = vmatpush.msra.mxu0 0.0
        %2065 = vmatpush.msra.mxu0 0.0
        %2066 = vmatpush.msra.mxu0 0.0
        %2067 = vmatpush.msra.mxu0 0.0
        %2068 = vmatpush.msra.mxu0 0.0
        %2069 = vmatpush.msra.mxu0 0.0
        %2070 = vmatpush.msra.mxu0 0.0
        %2071 = vmatpush.msra.mxu0 0.0
        %2072 = vmatpush.msra.mxu0 0.0
        %2073 = vmatpush.msra.mxu0 0.0
        %v2074 = vand.u32 %v365, 4294901760
        %v2075 = vsub.f32 %v365, %v2074
        %v2076 = vand.u32 %v2075, 4294901760
        %2077 = vmatpush.msra.mxu0 %v2076
        %v2078 = vand.u32 %v363, 4294901760
        %v2079 = vsub.f32 %v363, %v2078
        %v2080 = vand.u32 %v2079, 4294901760
        %2081 = vmatpush.msra.mxu0 %v2080
        %v2082 = vand.u32 %v1871, 4294901760
        %2083 = vmatmul.f32.gmra.mxu0 %v2082
        %v2084 = vpop.f32.mrf.mxu0
        %v2085 = vadd.f32 %v2040, %v2084
        %v2086 = vand.u32 %v1874, 4294901760
        %2087 = vmatmul.f32.gmra.mxu0 %v2086
        %v2088 = vpop.f32.mrf.mxu0
        %v2089 = vadd.f32 %v2046, %v2088
        %v2090 = vand.u32 %v1877, 4294901760
        %2091 = vmatmul.f32.gmra.mxu0 %v2090
        %v2092 = vpop.f32.mrf.mxu0
        %v2093 = vadd.f32 %v2052, %v2092
        %v2094 = vand.u32 %v1880, 4294901760
        %2095 = vmatmul.f32.gmra.mxu0 %v2094
        %v2096 = vpop.f32.mrf.mxu0
        %v2097 = vadd.f32 %v2058, %v2096
        %2098 = vdwg.mxu0
        %2099 = vmatpush.msra.mxu0 0.0
        %2100 = vmatpush.msra.mxu0 0.0
        %2101 = vmatpush.msra.mxu0 0.0
        %2102 = vmatpush.msra.mxu0 0.0
        %2103 = vmatpush.msra.mxu0 0.0
        %2104 = vmatpush.msra.mxu0 0.0
        %2105 = vmatpush.msra.mxu0 0.0
        %2106 = vmatpush.msra.mxu0 0.0
        %2107 = vmatpush.msra.mxu0 0.0
        %2108 = vmatpush.msra.mxu0 0.0
        %2109 = vmatpush.msra.mxu0 0.0
        %2110 = vmatpush.msra.mxu0 0.0
        %2111 = vmatpush.msra.mxu0 0.0
        %2112 = vmatpush.msra.mxu0 0.0
        %v2113 = vand.u32 %v365, 4294901760
        %2114 = vmatpush.msra.mxu0 %v2113
        %v2115 = vand.u32 %v363, 4294901760
        %2116 = vmatpush.msra.mxu0 %v2115
        %v2117 = vand.u32 %v1871, 4294901760
        %2118 = vmatmul.f32.gmra.mxu0 %v2117
        %v2119 = vpop.f32.mrf.mxu0
        %v2120 = vadd.f32 %v2085, %v2119
        %v2121 = vand.u32 %v1874, 4294901760
        %2122 = vmatmul.f32.gmra.mxu0 %v2121
        %v2123 = vpop.f32.mrf.mxu0
        %v2124 = vadd.f32 %v2089, %v2123
        %v2125 = vand.u32 %v1877, 4294901760
        %2126 = vmatmul.f32.gmra.mxu0 %v2125
        %v2127 = vpop.f32.mrf.mxu0
        %v2128 = vadd.f32 %v2093, %v2127
        %v2129 = vand.u32 %v1880, 4294901760
        %2130 = vmatmul.f32.gmra.mxu0 %v2129
        %v2131 = vpop.f32.mrf.mxu0
        %v2132 = vadd.f32 %v2097, %v2131
        %2133 = vdwg.mxu0
        %2134 = vmatpush.msra.mxu0 0.0
        %2135 = vmatpush.msra.mxu0 0.0
        %2136 = vmatpush.msra.mxu0 0.0
        %2137 = vmatpush.msra.mxu0 0.0
        %2138 = vmatpush.msra.mxu0 0.0
        %2139 = vmatpush.msra.mxu0 0.0
        %2140 = vmatpush.msra.mxu0 0.0
        %2141 = vmatpush.msra.mxu0 0.0
        %2142 = vmatpush.msra.mxu0 0.0
        %2143 = vmatpush.msra.mxu0 0.0
        %2144 = vmatpush.msra.mxu0 0.0
        %2145 = vmatpush.msra.mxu0 0.0
        %2146 = vmatpush.msra.mxu0 0.0
        %2147 = vmatpush.msra.mxu0 0.0
        %v2148 = vand.u32 %v366, 4294901760
        %2149 = vmatpush.msra.mxu0 %v2148
        %v2150 = vand.u32 %v364, 4294901760
        %2151 = vmatpush.msra.mxu0 %v2150
        %v2152 = vand.u32 %v1871, 4294901760
        %v2153 = vsub.f32 %v1871, %v2152
        %v2154 = vand.u32 %v2153, 4294901760
        %v2155 = vsub.f32 %v2153, %v2154
        %v2156 = vand.u32 %v2155, 4294901760
        %2157 = vmatmul.f32.gmra.mxu0 %v2156
        %v2158 = vpop.f32.mrf.mxu0
        %v2159 = vadd.f32 0.0, %v2158
        %v2160 = vand.u32 %v1874, 4294901760
        %v2161 = vsub.f32 %v1874, %v2160
        %v2162 = vand.u32 %v2161, 4294901760
        %v2163 = vsub.f32 %v2161, %v2162
        %v2164 = vand.u32 %v2163, 4294901760
        %2165 = vmatmul.f32.gmra.mxu0 %v2164
        %v2166 = vpop.f32.mrf.mxu0
        %v2167 = vadd.f32 0.0, %v2166
        %v2168 = vand.u32 %v1877, 4294901760
        %v2169 = vsub.f32 %v1877, %v2168
        %v2170 = vand.u32 %v2169, 4294901760
        %v2171 = vsub.f32 %v2169, %v2170
        %v2172 = vand.u32 %v2171, 4294901760
        %2173 = vmatmul.f32.gmra.mxu0 %v2172
        %v2174 = vpop.f32.mrf.mxu0
        %v2175 = vadd.f32 0.0, %v2174
        %v2176 = vand.u32 %v1880, 4294901760
        %v2177 = vsub.f32 %v1880, %v2176
        %v2178 = vand.u32 %v2177, 4294901760
        %v2179 = vsub.f32 %v2177, %v2178
        %v2180 = vand.u32 %v2179, 4294901760
        %2181 = vmatmul.f32.gmra.mxu0 %v2180
        %v2182 = vpop.f32.mrf.mxu0
        %v2183 = vadd.f32 0.0, %v2182
        %2184 = vdwg.mxu0
        %2185 = vmatpush.msra.mxu0 0.0
        %2186 = vmatpush.msra.mxu0 0.0
        %2187 = vmatpush.msra.mxu0 0.0
        %2188 = vmatpush.msra.mxu0 0.0
        %2189 = vmatpush.msra.mxu0 0.0
        %2190 = vmatpush.msra.mxu0 0.0
        %2191 = vmatpush.msra.mxu0 0.0
        %2192 = vmatpush.msra.mxu0 0.0
        %2193 = vmatpush.msra.mxu0 0.0
        %2194 = vmatpush.msra.mxu0 0.0
        %2195 = vmatpush.msra.mxu0 0.0
        %2196 = vmatpush.msra.mxu0 0.0
        %2197 = vmatpush.msra.mxu0 0.0
        %2198 = vmatpush.msra.mxu0 0.0
        %v2199 = vand.u32 %v366, 4294901760
        %v2200 = vsub.f32 %v366, %v2199
        %v2201 = vand.u32 %v2200, 4294901760
        %v2202 = vsub.f32 %v2200, %v2201
        %v2203 = vand.u32 %v2202, 4294901760
        %2204 = vmatpush.msra.mxu0 %v2203
        %v2205 = vand.u32 %v364, 4294901760
        %v2206 = vsub.f32 %v364, %v2205
        %v2207 = vand.u32 %v2206, 4294901760
        %v2208 = vsub.f32 %v2206, %v2207
        %v2209 = vand.u32 %v2208, 4294901760
        %2210 = vmatpush.msra.mxu0 %v2209
        %v2211 = vand.u32 %v1871, 4294901760
        %2212 = vmatmul.f32.gmra.mxu0 %v2211
        %v2213 = vpop.f32.mrf.mxu0
        %v2214 = vadd.f32 %v2159, %v2213
        %v2215 = vand.u32 %v1874, 4294901760
        %2216 = vmatmul.f32.gmra.mxu0 %v2215
        %v2217 = vpop.f32.mrf.mxu0
        %v2218 = vadd.f32 %v2167, %v2217
        %v2219 = vand.u32 %v1877, 4294901760
        %2220 = vmatmul.f32.gmra.mxu0 %v2219
        %v2221 = vpop.f32.mrf.mxu0
        %v2222 = vadd.f32 %v2175, %v2221
        %v2223 = vand.u32 %v1880, 4294901760
        %2224 = vmatmul.f32.gmra.mxu0 %v2223
        %v2225 = vpop.f32.mrf.mxu0
        %v2226 = vadd.f32 %v2183, %v2225
        %2227 = vdwg.mxu0
        %2228 = vmatpush.msra.mxu0 0.0
        %2229 = vmatpush.msra.mxu0 0.0
        %2230 = vmatpush.msra.mxu0 0.0
        %2231 = vmatpush.msra.mxu0 0.0
        %2232 = vmatpush.msra.mxu0 0.0
        %2233 = vmatpush.msra.mxu0 0.0
        %2234 = vmatpush.msra.mxu0 0.0
        %2235 = vmatpush.msra.mxu0 0.0
        %2236 = vmatpush.msra.mxu0 0.0
        %2237 = vmatpush.msra.mxu0 0.0
        %2238 = vmatpush.msra.mxu0 0.0
        %2239 = vmatpush.msra.mxu0 0.0
        %2240 = vmatpush.msra.mxu0 0.0
        %2241 = vmatpush.msra.mxu0 0.0
        %v2242 = vand.u32 %v366, 4294901760
        %v2243 = vsub.f32 %v366, %v2242
        %2244 = vmatpush.msra.mxu0 %v2243
        %v2245 = vand.u32 %v364, 4294901760
        %v2246 = vsub.f32 %v364, %v2245
        %2247 = vmatpush.msra.mxu0 %v2246
        %v2248 = vand.u32 %v1871, 4294901760
        %v2249 = vsub.f32 %v1871, %v2248
        %2250 = vmatmul.f32.gmra.mxu0 %v2249
        %v2251 = vpop.f32.mrf.mxu0
        %v2252 = vadd.f32 %v2214, %v2251
        %v2253 = vand.u32 %v1874, 4294901760
        %v2254 = vsub.f32 %v1874, %v2253
        %2255 = vmatmul.f32.gmra.mxu0 %v2254
        %v2256 = vpop.f32.mrf.mxu0
        %v2257 = vadd.f32 %v2218, %v2256
        %v2258 = vand.u32 %v1877, 4294901760
        %v2259 = vsub.f32 %v1877, %v2258
        %2260 = vmatmul.f32.gmra.mxu0 %v2259
        %v2261 = vpop.f32.mrf.mxu0
        %v2262 = vadd.f32 %v2222, %v2261
        %v2263 = vand.u32 %v1880, 4294901760
        %v2264 = vsub.f32 %v1880, %v2263
        %2265 = vmatmul.f32.gmra.mxu0 %v2264
        %v2266 = vpop.f32.mrf.mxu0
        %v2267 = vadd.f32 %v2226, %v2266
        %2268 = vdwg.mxu0
        %2269 = vmatpush.msra.mxu0 0.0
        %2270 = vmatpush.msra.mxu0 0.0
        %2271 = vmatpush.msra.mxu0 0.0
        %2272 = vmatpush.msra.mxu0 0.0
        %2273 = vmatpush.msra.mxu0 0.0
        %2274 = vmatpush.msra.mxu0 0.0
        %2275 = vmatpush.msra.mxu0 0.0
        %2276 = vmatpush.msra.mxu0 0.0
        %2277 = vmatpush.msra.mxu0 0.0
        %2278 = vmatpush.msra.mxu0 0.0
        %2279 = vmatpush.msra.mxu0 0.0
        %2280 = vmatpush.msra.mxu0 0.0
        %2281 = vmatpush.msra.mxu0 0.0
        %2282 = vmatpush.msra.mxu0 0.0
        %v2283 = vand.u32 %v366, 4294901760
        %2284 = vmatpush.msra.mxu0 %v2283
        %v2285 = vand.u32 %v364, 4294901760
        %2286 = vmatpush.msra.mxu0 %v2285
        %v2287 = vand.u32 %v1871, 4294901760
        %v2288 = vsub.f32 %v1871, %v2287
        %v2289 = vand.u32 %v2288, 4294901760
        %2290 = vmatmul.f32.gmra.mxu0 %v2289
        %v2291 = vpop.f32.mrf.mxu0
        %v2292 = vadd.f32 %v2252, %v2291
        %v2293 = vand.u32 %v1874, 4294901760
        %v2294 = vsub.f32 %v1874, %v2293
        %v2295 = vand.u32 %v2294, 4294901760
        %2296 = vmatmul.f32.gmra.mxu0 %v2295
        %v2297 = vpop.f32.mrf.mxu0
        %v2298 = vadd.f32 %v2257, %v2297
        %v2299 = vand.u32 %v1877, 4294901760
        %v2300 = vsub.f32 %v1877, %v2299
        %v2301 = vand.u32 %v2300, 4294901760
        %2302 = vmatmul.f32.gmra.mxu0 %v2301
        %v2303 = vpop.f32.mrf.mxu0
        %v2304 = vadd.f32 %v2262, %v2303
        %v2305 = vand.u32 %v1880, 4294901760
        %v2306 = vsub.f32 %v1880, %v2305
        %v2307 = vand.u32 %v2306, 4294901760
        %2308 = vmatmul.f32.gmra.mxu0 %v2307
        %v2309 = vpop.f32.mrf.mxu0
        %v2310 = vadd.f32 %v2267, %v2309
        %2311 = vdwg.mxu0
        %2312 = vmatpush.msra.mxu0 0.0
        %2313 = vmatpush.msra.mxu0 0.0
        %2314 = vmatpush.msra.mxu0 0.0
        %2315 = vmatpush.msra.mxu0 0.0
        %2316 = vmatpush.msra.mxu0 0.0
        %2317 = vmatpush.msra.mxu0 0.0
        %2318 = vmatpush.msra.mxu0 0.0
        %2319 = vmatpush.msra.mxu0 0.0
        %2320 = vmatpush.msra.mxu0 0.0
        %2321 = vmatpush.msra.mxu0 0.0
        %2322 = vmatpush.msra.mxu0 0.0
        %2323 = vmatpush.msra.mxu0 0.0
        %2324 = vmatpush.msra.mxu0 0.0
        %2325 = vmatpush.msra.mxu0 0.0
        %v2326 = vand.u32 %v366, 4294901760
        %v2327 = vsub.f32 %v366, %v2326
        %v2328 = vand.u32 %v2327, 4294901760
        %2329 = vmatpush.msra.mxu0 %v2328
        %v2330 = vand.u32 %v364, 4294901760
        %v2331 = vsub.f32 %v364, %v2330
        %v2332 = vand.u32 %v2331, 4294901760
        %2333 = vmatpush.msra.mxu0 %v2332
        %v2334 = vand.u32 %v1871, 4294901760
        %2335 = vmatmul.f32.gmra.mxu0 %v2334
        %v2336 = vpop.f32.mrf.mxu0
        %v2337 = vadd.f32 %v2292, %v2336
        %v2338 = vand.u32 %v1874, 4294901760
        %2339 = vmatmul.f32.gmra.mxu0 %v2338
        %v2340 = vpop.f32.mrf.mxu0
        %v2341 = vadd.f32 %v2298, %v2340
        %v2342 = vand.u32 %v1877, 4294901760
        %2343 = vmatmul.f32.gmra.mxu0 %v2342
        %v2344 = vpop.f32.mrf.mxu0
        %v2345 = vadd.f32 %v2304, %v2344
        %v2346 = vand.u32 %v1880, 4294901760
        %2347 = vmatmul.f32.gmra.mxu0 %v2346
        %v2348 = vpop.f32.mrf.mxu0
        %v2349 = vadd.f32 %v2310, %v2348
        %2350 = vdwg.mxu0
        %2351 = vmatpush.msra.mxu0 0.0
        %2352 = vmatpush.msra.mxu0 0.0
        %2353 = vmatpush.msra.mxu0 0.0
        %2354 = vmatpush.msra.mxu0 0.0
        %2355 = vmatpush.msra.mxu0 0.0
        %2356 = vmatpush.msra.mxu0 0.0
        %2357 = vmatpush.msra.mxu0 0.0
        %2358 = vmatpush.msra.mxu0 0.0
        %2359 = vmatpush.msra.mxu0 0.0
        %2360 = vmatpush.msra.mxu0 0.0
        %2361 = vmatpush.msra.mxu0 0.0
        %2362 = vmatpush.msra.mxu0 0.0
        %2363 = vmatpush.msra.mxu0 0.0
        %2364 = vmatpush.msra.mxu0 0.0
        %v2365 = vand.u32 %v366, 4294901760
        %2366 = vmatpush.msra.mxu0 %v2365
        %v2367 = vand.u32 %v364, 4294901760
        %2368 = vmatpush.msra.mxu0 %v2367
        %v2369 = vand.u32 %v1871, 4294901760
        %2370 = vmatmul.f32.gmra.mxu0 %v2369
        %v2371 = vpop.f32.mrf.mxu0
        %v2372 = vadd.f32 %v2337, %v2371
        %v2373 = vand.u32 %v1874, 4294901760
        %2374 = vmatmul.f32.gmra.mxu0 %v2373
        %v2375 = vpop.f32.mrf.mxu0
        %v2376 = vadd.f32 %v2341, %v2375
        %v2377 = vand.u32 %v1877, 4294901760
        %2378 = vmatmul.f32.gmra.mxu0 %v2377
        %v2379 = vpop.f32.mrf.mxu0
        %v2380 = vadd.f32 %v2345, %v2379
        %v2381 = vand.u32 %v1880, 4294901760
        %2382 = vmatmul.f32.gmra.mxu0 %v2381
        %v2383 = vpop.f32.mrf.mxu0
        %v2384 = vadd.f32 %v2349, %v2383
        %2385 = vdwg.mxu0
        %v2386 = vmul.f32 %v899, %v2120
        %v2387 = vmul.f32 %v901, %v2372
        %v2388 = vmul.f32 %v903, %v2124
        %v2389 = vmul.f32 %v905, %v2376
        %v2390 = vmul.f32 %v907, %v2128
        %v2391 = vmul.f32 %v909, %v2380
        %v2392 = vmul.f32 %v911, %v2132
        %v2393 = vmul.f32 %v913, %v2384
        %2394 = vst [vmem:[%s191] sm:$0xff] %v2386
        %2395 = vst [vmem:[%s191 + $0x8] sm:$0xff] %v2387
        %2396 = vst [vmem:[%s191 + $0x10] sm:$0xff] %v2388
        %2397 = vst [vmem:[%s191 + $0x18] sm:$0xff] %v2389
        %2398 = vst [vmem:[%s191 + $0x20] sm:$0xff] %v2390
        %2399 = vst [vmem:[%s191 + $0x28] sm:$0xff] %v2391
        %2400 = vst [vmem:[%s191 + $0x30] sm:$0xff] %v2392
        %2401 = vst [vmem:[%s191 + $0x38] sm:$0xff] %v2393
        %s2402 = sand.u32 %s115, 1
        %s2403 = scalar_lea.sflag [#allocation3], %s2402
        %s2404 = sand.u32 %s115, 1
        %s2405 = smul.addr %s2404, 64
        %s2406 = scalar_lea.vmem [#allocation2], %s2405
        // Predicated region
        $region37: #{tpu_custom_call.1} parent=35 // pred_check
          %p2407 = pneg %p125
        $region38: #{tpu_custom_call.1} parent=35 // pred_check_branch
          %2409 = sbr.rel (%p2407) target = $region40
        $region39: #{tpu_custom_call.1} parent=35 // pred_region
          %s2410 = smul.u32 4, %s18
          %2412 = vsyncadd %s2403, 0
          %s2413 = smul.addr %s2410, 2
          %s2414 = smul.addr %s2413, 8
          %s2415 = scalar_lea.hbm %s4, %s2414
          %s2416 = sshll.u32 %s2406, 4
          %s2417 = int_to_ptr.vmem [resolvable:$true] %s2416
          %s2418 = sshll.u32 %s2415, 4
          %s2419 = int_to_ptr.hbm [resolvable:$true] %s2418
          %2424 = dma.vmem_to_hbm [thread:$0]  %s2417, 1024, %s2419, %s2403, 256, 256, 16
        $region40: #{tpu_custom_call.1} parent=35 // pred_fallthru
          _
      $region36: #{tpu_custom_call.1} parent=5 // pred_fallthru
        _
      %p2425 = scmp.le.s32.totalorder 2, %s13
      // Predicated region
      $region41: #{tpu_custom_call.1} parent=5 // pred_check
        %p2426 = pneg %p2425
      $region42: #{tpu_custom_call.1} parent=5 // pred_check_branch
        %2428 = sbr.rel (%p2426) target = $region44
      $region43: #{tpu_custom_call.1} parent=5 // pred_region
        %s2429 = ssub.s32 %s13, 2
        // Predicated region
        $region45: #{tpu_custom_call.1} parent=43 // pred_check
          %p2430 = pneg %p131
        $region46: #{tpu_custom_call.1} parent=43 // pred_check_branch
          %2432 = sbr.rel (%p2430) target = $region48
        $region47: #{tpu_custom_call.1} parent=43 // pred_region
          %s2433 = sand.u32 %s116, 1
          %s2434 = scalar_lea.sflag [#allocation3], %s2433
          %s2435 = sand.u32 %s116, 1
          %s2436 = smul.addr %s2435, 64
          %s2437 = scalar_lea.vmem [#allocation2], %s2436
          %2439 = dma.done %s2434, 1024
        $region48: #{tpu_custom_call.1} parent=43 // pred_fallthru
          _
      $region44: #{tpu_custom_call.1} parent=5 // pred_fallthru
        _
    $region6: #{tpu_custom_call.1} parent=1 // loop_footer
      %s17 = sadd.s32 1, %s13
    $region7: #{tpu_custom_call.1} parent=1 // loop_footer_branch
      %12 = sbr.rel target = $region3
    $region8: #{tpu_custom_call.1} parent=1 // loop_exit
      _
    %2440 = vsyncpa [#allocation3], 1
    %s2441 = scalar_lea.sflag [#allocation3], 1
    %2442 = vsyncpa %s2441, 1

</llo_original>
